<compile_context>
chip_gen: v6e
topology: v6e:2x2x1
jax: 0.10.0
libtpu: 0.0.40
codegen_flags: <defaults>
</compile_context>

<pallas_src>
import numpy as np
import jax
import jax.numpy as jnp
from jax.experimental import pallas as pl
from jax.experimental.pallas import tpu as pltpu


def _round_up(n, m):
    return ((n + m - 1) // m) * m


def _banded_conv1d_weight(w_t, l_in, l_out, pad):
    """Embed a PyTorch Conv1d weight (F_out, C_in, K) into a dense
    (l_in*C_in, l_out*F_out) matrix W so that, with the NLC activation
    flattened per-sample as x_flat[s, u*C_in + c] = x[s, u, c],

        y_flat[s, t*F_out + f] = x_flat[s, :] @ W[:, t*F_out + f]

    equals Conv1d(..., padding=pad) (stride 1, dilation 1).
    Built host-side in NumPy so trace/compile time is O(1) in sequence len."""
    w = np.asarray(w_t, dtype=np.float32)                # (F_out, C_in, K)
    f_out, c_in, k_sz = w.shape
    w_kcf = np.transpose(w, (2, 1, 0))                   # (K, C_in, F_out)
    W = np.zeros((l_in, c_in, l_out, f_out), np.float32)
    for t in range(l_out):
        for k in range(k_sz):
            u = t + k - pad
            if 0 <= u < l_in:
                W[u, :, t, :] = w_kcf[k]
    return W.reshape(l_in * c_in, l_out * f_out)


def peptide_cnn_forward(x, w1_t, b1, w2_t, b2, wfc1_t, bfc1, wfc2_t, bfc2,
                        paddings, *, bt=None, max_bt=2048,
                        dot_dtype=jnp.bfloat16, out_dtype=jnp.float32,
                        io_buffers=None):
    """x: (B, L, Cin) float32; weights given in PyTorch layouts."""
    B, L, Cin = x.shape
    F, _, K1 = w1_t.shape
    _, _, K2 = w2_t.shape
    P1, P2 = paddings
    L1 = L + 2 * P1 - K1 + 1
    L2 = L1 + 2 * P2 - K2 + 1
    H1 = wfc1_t.shape[0]                 # 556
    H2 = wfc2_t.shape[0]                 # 256
    H1p = _round_up(H1, 128)             # 556 -> 640 (lane-dense FC1/FC2 K-dim)
    H2p = _round_up(H2, 128)             # already 256

    dsize = np.dtype(dot_dtype).itemsize
    osize = np.dtype(out_dtype).itemsize
    sub = 8 * (4 // dsize)               # sublane packing: 8 (f32) / 16 (bf16)

    # --- batch-tile selection: amortize step overhead, keep >=2 steps (v7x) --
    if bt is None:
        b_sub = _round_up(B, sub)
        bt = min(max_bt, b_sub)
        if b_sub >= 2 * sub:             # keep the "parallel" axis shardable
            bt = min(bt, _round_up((b_sub + 1) // 2, sub))
    assert bt % sub == 0, f"batch tile {bt} must be a multiple of {sub} for {dot_dtype}"
    Bp = _round_up(B, bt)

    # ---- wrapper-side layout glue (host-side weight permutes, no hot work) ---
    w1_k = jnp.asarray(_banded_conv1d_weight(w1_t, L, L1, P1), dot_dtype)   # (L*Cin,  L1*F)
    w2_k = jnp.asarray(_banded_conv1d_weight(w2_t, L1, L2, P2), dot_dtype)  # (L1*F,   L2*F)
    # PyTorch flattens the (B, F, L2) conv output channel-major (f*L2 + t);
    # our activation is flattened (t*F + f), so permute wfc1 accordingly,
    # and zero-pad the 556 dim to 640 for lane density (zeros -> bit identical).
    wfc1_np = (np.asarray(wfc1_t, np.float32).reshape(H1, F, L2)
               .transpose(2, 1, 0).reshape(L2 * F, H1))
    wfc1_pad = np.zeros((L2 * F, H1p), np.float32)
    wfc1_pad[:, :H1] = wfc1_np
    wfc1_k = jnp.asarray(wfc1_pad, dot_dtype)                               # (L2*F, H1p)
    wfc2_pad = np.zeros((H1p, H2p), np.float32)
    wfc2_pad[:H1, :H2] = np.asarray(wfc2_t, np.float32).T
    wfc2_k = jnp.asarray(wfc2_pad, dot_dtype)                               # (H1p, H2p)

    b1_k = jnp.asarray(np.tile(np.asarray(b1, np.float32), L1).reshape(1, L1 * F))
    b2_k = jnp.asarray(np.tile(np.asarray(b2, np.float32), L2).reshape(1, L2 * F))
    bfc1_pad = np.zeros((1, H1p), np.float32)
    bfc1_pad[0, :H1] = np.asarray(bfc1, np.float32)
    bfc1_k = jnp.asarray(bfc1_pad)
    bfc2_pad = np.zeros((1, H2p), np.float32)
    bfc2_pad[0, :H2] = np.asarray(bfc2, np.float32)
    bfc2_k = jnp.asarray(bfc2_pad)

    x_flat = jnp.pad(x, ((0, Bp - B), (0, 0), (0, 0))).reshape(Bp, L * Cin)
    x_flat = x_flat.astype(dot_dtype)

    def kernel(x_ref, w1_ref, b1_ref, w2_ref, b2_ref,
               wfc1_ref, bfc1_ref, wfc2_ref, bfc2_ref, out_ref):
        # Conv1d #1 + ReLU  (single banded MXU matmul, f32 accumulation)
        h1 = jnp.dot(x_ref[...], w1_ref[...],
                     preferred_element_type=jnp.float32)
        h1 = jnp.maximum(h1 + b1_ref[...], 0.0)            # (bt, L1*F) f32
        # Conv1d #2 + ReLU  (padding folded into the banded weight)
        h2 = jnp.dot(h1.astype(dot_dtype), w2_ref[...],
                     preferred_element_type=jnp.float32)
        h2 = jnp.maximum(h2 + b2_ref[...], 0.0)            # (bt, L2*F) f32
        # FC1 + ReLU  (PyTorch channel-major flatten folded into wfc1 layout)
        z = jnp.dot(h2.astype(dot_dtype), wfc1_ref[...],
                    preferred_element_type=jnp.float32)
        z = jnp.maximum(z + bfc1_ref[...], 0.0)            # (bt, H1p) f32
        # Dropout is identity at inference.
        # TODO(synk): train-mode dropout (random mask + 1/(1-p) scale) not implemented.
        out = jnp.dot(z.astype(dot_dtype), wfc2_ref[...],
                      preferred_element_type=jnp.float32) + bfc2_ref[...]
        out_ref[...] = out.astype(out_ref.dtype)           # lane-dense (bt, H2p)

    # --- cost estimate & VMEM budget (advisory / scoped-limit) ---------------
    flops = 2 * Bp * (L * Cin * L1 * F + L1 * F * L2 * F + L2 * F * H1p + H1p * H2p)
    weight_bytes = sum(int(np.prod(a.shape)) * a.dtype.itemsize
                       for a in (w1_k, b1_k, w2_k, b2_k, wfc1_k, bfc1_k, wfc2_k, bfc2_k))
    bytes_accessed = Bp * L * Cin * dsize + Bp * H2p * osize + weight_bytes
    cost = pl.CostEstimate(flops=int(flops), transcendentals=0,
                           bytes_accessed=int(bytes_accessed))

    io_buf = 2 if io_buffers is None else int(io_buffers)
    inter_bytes = bt * (L1 * F + L2 * F + H1p + H2p) * (4 + dsize)
    vmem_est = (io_buf * bt * L * Cin * dsize + io_buf * bt * H2p * osize
                + 2 * weight_bytes + inter_bytes)
    vmem_limit = int(min(max(2 * vmem_est, 32 << 20), 64 << 20))  # v7x-safe cap

    def x_out_spec(shape):
        if io_buffers is None:
            return pl.BlockSpec(shape, lambda i: (i, 0))
        return pl.BlockSpec(shape, lambda i: (i, 0),
                            pipeline_mode=pl.Buffered(buffer_count=io_buf))

    def build(single_buffer_weights):
        def const_spec(a):
            nd = a.ndim
            imap = lambda i, _nd=nd: (0,) * _nd
            if single_buffer_weights:
                # Constant index_map -> resident weights; one VMEM copy is enough.
                return pl.BlockSpec(a.shape, imap,
                                    pipeline_mode=pl.Buffered(buffer_count=1))
            return pl.BlockSpec(a.shape, imap)

        return pl.pallas_call(
            kernel,
            out_shape=jax.ShapeDtypeStruct((Bp, H2p), out_dtype),
            grid=(Bp // bt,),
            in_specs=[
                x_out_spec((bt, L * Cin)),
                const_spec(w1_k), const_spec(b1_k),
                const_spec(w2_k), const_spec(b2_k),
                const_spec(wfc1_k), const_spec(bfc1_k),
                const_spec(wfc2_k), const_spec(bfc2_k),
            ],
            out_specs=x_out_spec((bt, H2p)),
            compiler_params=pltpu.CompilerParams(
                dimension_semantics=("parallel",),
                vmem_limit_bytes=vmem_limit),
            cost_estimate=cost,
        )

    args = (x_flat, w1_k, b1_k, w2_k, b2_k, wfc1_k, bfc1_k, wfc2_k, bfc2_k)
    try:
        out = jax.block_until_ready(build(True)(*args))
    except Exception:
        # Fallback for environments where Buffered(1) pipeline_mode is rejected.
        out = build(False)(*args)
    return out[:B, :H2]


def peptide_cnn_reference(x, w1_t, b1, w2_t, b2, wfc1_t, bfc1, wfc2_t, bfc2,
                          paddings):
    """Pure-JAX reference with exact PyTorch (NCL conv, channel-major flatten) semantics."""
    xt = jnp.transpose(x, (0, 2, 1))                  # (B, Cin, L)
    y1 = jax.lax.conv_general_dilated(
        xt, w1_t, window_strides=(1,), padding=[(paddings[0], paddings[0])],
        dimension_numbers=('NCH', 'OIH', 'NCH'))
    y1 = jax.nn.relu(y1 + b1[None, :, None])
    y2 = jax.lax.conv_general_dilated(
        y1, w2_t, window_strides=(1,), padding=[(paddings[1], paddings[1])],
        dimension_numbers=('NCH', 'OIH', 'NCH'))
    y2 = jax.nn.relu(y2 + b2[None, :, None])
    flat = y2.reshape(y2.shape[0], -1)                # (B, F*L2) channel-major
    z = jax.nn.relu(flat @ wfc1_t.T + bfc1)
    return z @ wfc2_t.T + bfc2


if __name__ == "__main__":
    # Small shapes consistent with the module's params dict.
    B, L, Cin = 2, 16, 8          # batch_size, length_peptide_sequence, peptide_input_dim
    F = 16                        # number_of_filters
    K = (3, 3)                    # kernel_sizes
    P = (1, 1)                    # padding_sizes
    L1 = L + 2 * P[0] - K[0] + 1
    L2 = L1 + 2 * P[1] - K[1] + 1
    D = F * L2                    # self.output_dimension

    key = jax.random.PRNGKey(0)
    ks = jax.random.split(key, 9)
    std = 0.05                    # _create_weights(mean=0.0, std=0.05)
    w1_t = std * jax.random.normal(ks[0], (F, Cin, K[0]), jnp.float32)
    b1 = std * jax.random.normal(ks[1], (F,), jnp.float32)
    w2_t = std * jax.random.normal(ks[2], (F, F, K[1]), jnp.float32)
    b2 = std * jax.random.normal(ks[3], (F,), jnp.float32)
    wfc1_t = std * jax.random.normal(ks[4], (556, D), jnp.float32)
    bfc1 = std * jax.random.normal(ks[5], (556,), jnp.float32)
    wfc2_t = std * jax.random.normal(ks[6], (256, 556), jnp.float32)
    bfc2 = std * jax.random.normal(ks[7], (256,), jnp.float32)
    x = jax.random.normal(ks[8], (B, L, Cin), jnp.float32)

    # 1) tiny batch, f32 MXU operands, strict correctness check (single step)
    out = peptide_cnn_forward(x, w1_t, b1, w2_t, b2, wfc1_t, bfc1, wfc2_t,
                              bfc2, P, dot_dtype=jnp.float32)
    out = jax.block_until_ready(out)
    ref = peptide_cnn_reference(x, w1_t, b1, w2_t, b2, wfc1_t, bfc1, wfc2_t,
                                bfc2, P)
    assert out.shape == (B, 256)
    np.testing.assert_allclose(np.asarray(out), np.asarray(ref),
                               rtol=1e-4, atol=1e-4)

    # 2) ragged batch, default bf16 operands, auto bt keeps a 2-step grid
    B2 = 37
    x2 = jax.random.normal(jax.random.PRNGKey(1), (B2, L, Cin), jnp.float32)
    out2 = jax.block_until_ready(
        peptide_cnn_forward(x2, w1_t, b1, w2_t, b2, wfc1_t, bfc1, wfc2_t,
                            bfc2, P))
    ref2 = peptide_cnn_reference(x2, w1_t, b1, w2_t, b2, wfc1_t, bfc1, wfc2_t,
                                 bfc2, P)
    assert out2.shape == (B2, 256)
    np.testing.assert_allclose(np.asarray(out2), np.asarray(ref2),
                               rtol=5e-2, atol=5e-3)

    # 3) bf16 output path (halves writeback bytes on v6e); matches path 2
    out3 = jax.block_until_ready(
        peptide_cnn_forward(x2, w1_t, b1, w2_t, b2, wfc1_t, bfc1, wfc2_t,
                            bfc2, P, out_dtype=jnp.bfloat16))
    assert out3.shape == (B2, 256) and out3.dtype == jnp.bfloat16
    np.testing.assert_allclose(np.asarray(out3, np.float32), np.asarray(out2),
                               rtol=1e-2, atol=1e-2)

    print("KERNEL_OK")
</pallas_src>

<mosaic_0001>
module attributes {stable_mosaic.version = 11 : i64} {
  func.func @kernel(%arg0: i32, %arg1: memref<8x128xf32, #tpu.memory_space<vmem>>, %arg2: memref<128x256xf32, #tpu.memory_space<vmem>>, %arg3: memref<1x256xf32, #tpu.memory_space<vmem>>, %arg4: memref<256x256xf32, #tpu.memory_space<vmem>>, %arg5: memref<1x256xf32, #tpu.memory_space<vmem>>, %arg6: memref<256x640xf32, #tpu.memory_space<vmem>>, %arg7: memref<1x640xf32, #tpu.memory_space<vmem>>, %arg8: memref<640x256xf32, #tpu.memory_space<vmem>>, %arg9: memref<1x256xf32, #tpu.memory_space<vmem>>, %arg10: memref<8x256xf32, #tpu.memory_space<vmem>>) attributes {dimension_semantics = [#tpu.dimension_semantics<parallel>], iteration_bounds = array<i64: 1>, scalar_prefetch = 0 : i64, scratch_operands = 0 : i64, tpu.core_type = #tpu.core_type<tc>, window_params = [{transform_indices = @transform_0, window_bounds = array<i64: 8, 128>}, {pipeline_mode = #tpu.pipeline_mode<synchronous>, transform_indices = @transform_1, window_bounds = array<i64: 128, 256>}, {pipeline_mode = #tpu.pipeline_mode<synchronous>, transform_indices = @transform_2, window_bounds = array<i64: 1, 256>}, {pipeline_mode = #tpu.pipeline_mode<synchronous>, transform_indices = @transform_3, window_bounds = array<i64: 256, 256>}, {pipeline_mode = #tpu.pipeline_mode<synchronous>, transform_indices = @transform_4, window_bounds = array<i64: 1, 256>}, {pipeline_mode = #tpu.pipeline_mode<synchronous>, transform_indices = @transform_5, window_bounds = array<i64: 256, 640>}, {pipeline_mode = #tpu.pipeline_mode<synchronous>, transform_indices = @transform_6, window_bounds = array<i64: 1, 640>}, {pipeline_mode = #tpu.pipeline_mode<synchronous>, transform_indices = @transform_7, window_bounds = array<i64: 640, 256>}, {pipeline_mode = #tpu.pipeline_mode<synchronous>, transform_indices = @transform_8, window_bounds = array<i64: 1, 256>}, {transform_indices = @transform_9, window_bounds = array<i64: 8, 256>}]} {
    %c0 = arith.constant 0 : index
    %c0_0 = arith.constant 0 : index
    %0 = vector.load %arg1[%c0, %c0_0] : memref<8x128xf32, #tpu.memory_space<vmem>>, vector<8x128xf32>
    %c0_1 = arith.constant 0 : index
    %c0_2 = arith.constant 0 : index
    %1 = vector.load %arg2[%c0_1, %c0_2] : memref<128x256xf32, #tpu.memory_space<vmem>>, vector<128x256xf32>
    %cst = arith.constant dense<0.000000e+00> : vector<8x256xf32>
    %2 = tpu.matmul %0, %1, %cst {dimension_numbers = #tpu.dot_dimension_numbers<[1], [0], [0], [1], [0, 0, 1, 1], [], []>} : vector<8x128xf32>, vector<128x256xf32>, vector<8x256xf32> -> vector<8x256xf32>
    %c0_3 = arith.constant 0 : index
    %c0_4 = arith.constant 0 : index
    %3 = vector.load %arg3[%c0_3, %c0_4] : memref<1x256xf32, #tpu.memory_space<vmem>>, vector<1x256xf32>
    %4 = vector.broadcast %3 : vector<1x256xf32> to vector<8x256xf32>
    %5 = arith.addf %2, %4 : vector<8x256xf32>
    %cst_5 = arith.constant 0.000000e+00 : f32
    %6 = vector.broadcast %cst_5 : f32 to vector<8x256xf32>
    %7 = arith.maximumf %5, %6 : vector<8x256xf32>
    %c0_6 = arith.constant 0 : index
    %c0_7 = arith.constant 0 : index
    %8 = vector.load %arg4[%c0_6, %c0_7] : memref<256x256xf32, #tpu.memory_space<vmem>>, vector<256x256xf32>
    %cst_8 = arith.constant dense<0.000000e+00> : vector<8x256xf32>
    %9 = tpu.matmul %7, %8, %cst_8 {dimension_numbers = #tpu.dot_dimension_numbers<[1], [0], [0], [1], [0, 0, 1, 1], [], []>} : vector<8x256xf32>, vector<256x256xf32>, vector<8x256xf32> -> vector<8x256xf32>
    %c0_9 = arith.constant 0 : index
    %c0_10 = arith.constant 0 : index
    %10 = vector.load %arg5[%c0_9, %c0_10] : memref<1x256xf32, #tpu.memory_space<vmem>>, vector<1x256xf32>
    %11 = vector.broadcast %10 : vector<1x256xf32> to vector<8x256xf32>
    %12 = arith.addf %9, %11 : vector<8x256xf32>
    %cst_11 = arith.constant 0.000000e+00 : f32
    %13 = vector.broadcast %cst_11 : f32 to vector<8x256xf32>
    %14 = arith.maximumf %12, %13 : vector<8x256xf32>
    %c0_12 = arith.constant 0 : index
    %c0_13 = arith.constant 0 : index
    %15 = vector.load %arg6[%c0_12, %c0_13] : memref<256x640xf32, #tpu.memory_space<vmem>>, vector<256x640xf32>
    %cst_14 = arith.constant dense<0.000000e+00> : vector<8x640xf32>
    %16 = tpu.matmul %14, %15, %cst_14 {dimension_numbers = #tpu.dot_dimension_numbers<[1], [0], [0], [1], [0, 0, 1, 1], [], []>} : vector<8x256xf32>, vector<256x640xf32>, vector<8x640xf32> -> vector<8x640xf32>
    %c0_15 = arith.constant 0 : index
    %c0_16 = arith.constant 0 : index
    %17 = vector.load %arg7[%c0_15, %c0_16] : memref<1x640xf32, #tpu.memory_space<vmem>>, vector<1x640xf32>
    %18 = vector.broadcast %17 : vector<1x640xf32> to vector<8x640xf32>
    %19 = arith.addf %16, %18 : vector<8x640xf32>
    %cst_17 = arith.constant 0.000000e+00 : f32
    %20 = vector.broadcast %cst_17 : f32 to vector<8x640xf32>
    %21 = arith.maximumf %19, %20 : vector<8x640xf32>
    %c0_18 = arith.constant 0 : index
    %c0_19 = arith.constant 0 : index
    %22 = vector.load %arg8[%c0_18, %c0_19] : memref<640x256xf32, #tpu.memory_space<vmem>>, vector<640x256xf32>
    %cst_20 = arith.constant dense<0.000000e+00> : vector<8x256xf32>
    %23 = tpu.matmul %21, %22, %cst_20 {dimension_numbers = #tpu.dot_dimension_numbers<[1], [0], [0], [1], [0, 0, 1, 1], [], []>} : vector<8x640xf32>, vector<640x256xf32>, vector<8x256xf32> -> vector<8x256xf32>
    %c0_21 = arith.constant 0 : index
    %c0_22 = arith.constant 0 : index
    %24 = vector.load %arg9[%c0_21, %c0_22] : memref<1x256xf32, #tpu.memory_space<vmem>>, vector<1x256xf32>
    %25 = vector.broadcast %24 : vector<1x256xf32> to vector<8x256xf32>
    %26 = arith.addf %23, %25 : vector<8x256xf32>
    %c0_23 = arith.constant 0 : index
    %c0_24 = arith.constant 0 : index
    %27 = vector.load %arg10[%c0_23, %c0_24] : memref<8x256xf32, #tpu.memory_space<vmem>>, vector<8x256xf32>
    tpu.vector_store %arg10[%c0_23, %c0_24], %26 {strides = array<i32>} : memref<8x256xf32, #tpu.memory_space<vmem>>, vector<8x256xf32>,
    return
  }
  func.func @transform_0(%arg0: i32) -> (i32, i32) {
    %c0_i32 = arith.constant 0 : i32
    %c0_i32_0 = arith.constant 0 : i32
    return %arg0, %c0_i32 : i32, i32
  }
  func.func @transform_1(%arg0: i32) -> (i32, i32) {
    %c0_i32 = arith.constant 0 : i32
    %c0_i32_0 = arith.constant 0 : i32
    %c0_i32_1 = arith.constant 0 : i32
    return %c0_i32, %c0_i32_0 : i32, i32
  }
  func.func @transform_2(%arg0: i32) -> (i32, i32) {
    %c0_i32 = arith.constant 0 : i32
    %c0_i32_0 = arith.constant 0 : i32
    %c0_i32_1 = arith.constant 0 : i32
    return %c0_i32, %c0_i32_0 : i32, i32
  }
  func.func @transform_3(%arg0: i32) -> (i32, i32) {
    %c0_i32 = arith.constant 0 : i32
    %c0_i32_0 = arith.constant 0 : i32
    %c0_i32_1 = arith.constant 0 : i32
    return %c0_i32, %c0_i32_0 : i32, i32
  }
  func.func @transform_4(%arg0: i32) -> (i32, i32) {
    %c0_i32 = arith.constant 0 : i32
    %c0_i32_0 = arith.constant 0 : i32
    %c0_i32_1 = arith.constant 0 : i32
    return %c0_i32, %c0_i32_0 : i32, i32
  }
  func.func @transform_5(%arg0: i32) -> (i32, i32) {
    %c0_i32 = arith.constant 0 : i32
    %c0_i32_0 = arith.constant 0 : i32
    %c0_i32_1 = arith.constant 0 : i32
    return %c0_i32, %c0_i32_0 : i32, i32
  }
  func.func @transform_6(%arg0: i32) -> (i32, i32) {
    %c0_i32 = arith.constant 0 : i32
    %c0_i32_0 = arith.constant 0 : i32
    %c0_i32_1 = arith.constant 0 : i32
    return %c0_i32, %c0_i32_0 : i32, i32
  }
  func.func @transform_7(%arg0: i32) -> (i32, i32) {
    %c0_i32 = arith.constant 0 : i32
    %c0_i32_0 = arith.constant 0 : i32
    %c0_i32_1 = arith.constant 0 : i32
    return %c0_i32, %c0_i32_0 : i32, i32
  }
  func.func @transform_8(%arg0: i32) -> (i32, i32) {
    %c0_i32 = arith.constant 0 : i32
    %c0_i32_0 = arith.constant 0 : i32
    %c0_i32_1 = arith.constant 0 : i32
    return %c0_i32, %c0_i32_0 : i32, i32
  }
  func.func @transform_9(%arg0: i32) -> (i32, i32) {
    %c0_i32 = arith.constant 0 : i32
    %c0_i32_0 = arith.constant 0 : i32
    return %arg0, %c0_i32 : i32, i32
  }
}

module attributes {stable_mosaic.version = 11 : i64} {
  func.func @kernel(%arg0: i32, %arg1: memref<8x128xf32, #tpu.memory_space<vmem>>, %arg2: memref<128x256xf32, #tpu.memory_space<vmem>>, %arg3: memref<1x256xf32, #tpu.memory_space<vmem>>, %arg4: memref<256x256xf32, #tpu.memory_space<vmem>>, %arg5: memref<1x256xf32, #tpu.memory_space<vmem>>, %arg6: memref<256x640xf32, #tpu.memory_space<vmem>>, %arg7: memref<1x640xf32, #tpu.memory_space<vmem>>, %arg8: memref<640x256xf32, #tpu.memory_space<vmem>>, %arg9: memref<1x256xf32, #tpu.memory_space<vmem>>, %arg10: memref<8x256xf32, #tpu.memory_space<vmem>>) attributes {dimension_semantics = [#tpu.dimension_semantics<parallel>], iteration_bounds = array<i64: 1>, scalar_prefetch = 0 : i64, scratch_operands = 0 : i64, tpu.core_type = #tpu.core_type<tc>, window_params = [{transform_indices = @transform_0, window_bounds = array<i64: 8, 128>}, {pipeline_mode = #tpu.pipeline_mode<synchronous>, transform_indices = @transform_1, window_bounds = array<i64: 128, 256>}, {pipeline_mode = #tpu.pipeline_mode<synchronous>, transform_indices = @transform_2, window_bounds = array<i64: 1, 256>}, {pipeline_mode = #tpu.pipeline_mode<synchronous>, transform_indices = @transform_3, window_bounds = array<i64: 256, 256>}, {pipeline_mode = #tpu.pipeline_mode<synchronous>, transform_indices = @transform_4, window_bounds = array<i64: 1, 256>}, {pipeline_mode = #tpu.pipeline_mode<synchronous>, transform_indices = @transform_5, window_bounds = array<i64: 256, 640>}, {pipeline_mode = #tpu.pipeline_mode<synchronous>, transform_indices = @transform_6, window_bounds = array<i64: 1, 640>}, {pipeline_mode = #tpu.pipeline_mode<synchronous>, transform_indices = @transform_7, window_bounds = array<i64: 640, 256>}, {pipeline_mode = #tpu.pipeline_mode<synchronous>, transform_indices = @transform_8, window_bounds = array<i64: 1, 256>}, {transform_indices = @transform_9, window_bounds = array<i64: 8, 256>}]} {
    %c0 = arith.constant 0 : index
    %c0_0 = arith.constant 0 : index
    %0 = vector.load %arg1[%c0, %c0_0] : memref<8x128xf32, #tpu.memory_space<vmem>>, vector<8x128xf32>
    %c0_1 = arith.constant 0 : index
    %c0_2 = arith.constant 0 : index
    %1 = vector.load %arg2[%c0_1, %c0_2] : memref<128x256xf32, #tpu.memory_space<vmem>>, vector<128x256xf32>
    %cst = arith.constant dense<0.000000e+00> : vector<8x256xf32>
    %2 = tpu.matmul %0, %1, %cst {dimension_numbers = #tpu.dot_dimension_numbers<[1], [0], [0], [1], [0, 0, 1, 1], [], []>} : vector<8x128xf32>, vector<128x256xf32>, vector<8x256xf32> -> vector<8x256xf32>
    %c0_3 = arith.constant 0 : index
    %c0_4 = arith.constant 0 : index
    %3 = vector.load %arg3[%c0_3, %c0_4] : memref<1x256xf32, #tpu.memory_space<vmem>>, vector<1x256xf32>
    %4 = vector.broadcast %3 : vector<1x256xf32> to vector<8x256xf32>
    %5 = arith.addf %2, %4 : vector<8x256xf32>
    %cst_5 = arith.constant 0.000000e+00 : f32
    %6 = vector.broadcast %cst_5 : f32 to vector<8x256xf32>
    %7 = arith.maximumf %5, %6 : vector<8x256xf32>
    %c0_6 = arith.constant 0 : index
    %c0_7 = arith.constant 0 : index
    %8 = vector.load %arg4[%c0_6, %c0_7] : memref<256x256xf32, #tpu.memory_space<vmem>>, vector<256x256xf32>
    %cst_8 = arith.constant dense<0.000000e+00> : vector<8x256xf32>
    %9 = tpu.matmul %7, %8, %cst_8 {dimension_numbers = #tpu.dot_dimension_numbers<[1], [0], [0], [1], [0, 0, 1, 1], [], []>} : vector<8x256xf32>, vector<256x256xf32>, vector<8x256xf32> -> vector<8x256xf32>
    %c0_9 = arith.constant 0 : index
    %c0_10 = arith.constant 0 : index
    %10 = vector.load %arg5[%c0_9, %c0_10] : memref<1x256xf32, #tpu.memory_space<vmem>>, vector<1x256xf32>
    %11 = vector.broadcast %10 : vector<1x256xf32> to vector<8x256xf32>
    %12 = arith.addf %9, %11 : vector<8x256xf32>
    %cst_11 = arith.constant 0.000000e+00 : f32
    %13 = vector.broadcast %cst_11 : f32 to vector<8x256xf32>
    %14 = arith.maximumf %12, %13 : vector<8x256xf32>
    %c0_12 = arith.constant 0 : index
    %c0_13 = arith.constant 0 : index
    %15 = vector.load %arg6[%c0_12, %c0_13] : memref<256x640xf32, #tpu.memory_space<vmem>>, vector<256x640xf32>
    %cst_14 = arith.constant dense<0.000000e+00> : vector<8x640xf32>
    %16 = tpu.matmul %14, %15, %cst_14 {dimension_numbers = #tpu.dot_dimension_numbers<[1], [0], [0], [1], [0, 0, 1, 1], [], []>} : vector<8x256xf32>, vector<256x640xf32>, vector<8x640xf32> -> vector<8x640xf32>
    %c0_15 = arith.constant 0 : index
    %c0_16 = arith.constant 0 : index
    %17 = vector.load %arg7[%c0_15, %c0_16] : memref<1x640xf32, #tpu.memory_space<vmem>>, vector<1x640xf32>
    %18 = vector.broadcast %17 : vector<1x640xf32> to vector<8x640xf32>
    %19 = arith.addf %16, %18 : vector<8x640xf32>
    %cst_17 = arith.constant 0.000000e+00 : f32
    %20 = vector.broadcast %cst_17 : f32 to vector<8x640xf32>
    %21 = arith.maximumf %19, %20 : vector<8x640xf32>
    %c0_18 = arith.constant 0 : index
    %c0_19 = arith.constant 0 : index
    %22 = vector.load %arg8[%c0_18, %c0_19] : memref<640x256xf32, #tpu.memory_space<vmem>>, vector<640x256xf32>
    %cst_20 = arith.constant dense<0.000000e+00> : vector<8x256xf32>
    %23 = tpu.matmul %21, %22, %cst_20 {dimension_numbers = #tpu.dot_dimension_numbers<[1], [0], [0], [1], [0, 0, 1, 1], [], []>} : vector<8x640xf32>, vector<640x256xf32>, vector<8x256xf32> -> vector<8x256xf32>
    %c0_21 = arith.constant 0 : index
    %c0_22 = arith.constant 0 : index
    %24 = vector.load %arg9[%c0_21, %c0_22] : memref<1x256xf32, #tpu.memory_space<vmem>>, vector<1x256xf32>
    %25 = vector.broadcast %24 : vector<1x256xf32> to vector<8x256xf32>
    %26 = arith.addf %23, %25 : vector<8x256xf32>
    %c0_23 = arith.constant 0 : index
    %c0_24 = arith.constant 0 : index
    %27 = vector.load %arg10[%c0_23, %c0_24] : memref<8x256xf32, #tpu.memory_space<vmem>>, vector<8x256xf32>
    tpu.vector_store %arg10[%c0_23, %c0_24], %26 {strides = array<i32>} : memref<8x256xf32, #tpu.memory_space<vmem>>, vector<8x256xf32>,
    return
  }
  func.func @transform_0(%arg0: i32) -> (i32, i32) {
    %c0_i32 = arith.constant 0 : i32
    %c0_i32_0 = arith.constant 0 : i32
    return %arg0, %c0_i32 : i32, i32
  }
  func.func @transform_1(%arg0: i32) -> (i32, i32) {
    %c0_i32 = arith.constant 0 : i32
    %c0_i32_0 = arith.constant 0 : i32
    %c0_i32_1 = arith.constant 0 : i32
    return %c0_i32, %c0_i32_0 : i32, i32
  }
  func.func @transform_2(%arg0: i32) -> (i32, i32) {
    %c0_i32 = arith.constant 0 : i32
    %c0_i32_0 = arith.constant 0 : i32
    %c0_i32_1 = arith.constant 0 : i32
    return %c0_i32, %c0_i32_0 : i32, i32
  }
  func.func @transform_3(%arg0: i32) -> (i32, i32) {
    %c0_i32 = arith.constant 0 : i32
    %c0_i32_0 = arith.constant 0 : i32
    %c0_i32_1 = arith.constant 0 : i32
    return %c0_i32, %c0_i32_0 : i32, i32
  }
  func.func @transform_4(%arg0: i32) -> (i32, i32) {
    %c0_i32 = arith.constant 0 : i32
    %c0_i32_0 = arith.constant 0 : i32
    %c0_i32_1 = arith.constant 0 : i32
    return %c0_i32, %c0_i32_0 : i32, i32
  }
  func.func @transform_5(%arg0: i32) -> (i32, i32) {
    %c0_i32 = arith.constant 0 : i32
    %c0_i32_0 = arith.constant 0 : i32
    %c0_i32_1 = arith.constant 0 : i32
    return %c0_i32, %c0_i32_0 : i32, i32
  }
  func.func @transform_6(%arg0: i32) -> (i32, i32) {
    %c0_i32 = arith.constant 0 : i32
    %c0_i32_0 = arith.constant 0 : i32
    %c0_i32_1 = arith.constant 0 : i32
    return %c0_i32, %c0_i32_0 : i32, i32
  }
  func.func @transform_7(%arg0: i32) -> (i32, i32) {
    %c0_i32 = arith.constant 0 : i32
    %c0_i32_0 = arith.constant 0 : i32
    %c0_i32_1 = arith.constant 0 : i32
    return %c0_i32, %c0_i32_0 : i32, i32
  }
  func.func @transform_8(%arg0: i32) -> (i32, i32) {
    %c0_i32 = arith.constant 0 : i32
    %c0_i32_0 = arith.constant 0 : i32
    %c0_i32_1 = arith.constant 0 : i32
    return %c0_i32, %c0_i32_0 : i32, i32
  }
  func.func @transform_9(%arg0: i32) -> (i32, i32) {
    %c0_i32 = arith.constant 0 : i32
    %c0_i32_0 = arith.constant 0 : i32
    return %arg0, %c0_i32 : i32, i32
  }
}

</mosaic_0001>

<llo_original>
// kernel: tpu_custom_call.1
$region0: #{tpu_custom_call.1}
  #allocation0 [shape = 'u32[]', space=smem, size = 0x4, offset = 0x4, fixed_abs, tag = 'smem constant byte address 0x4 - core index']
  #allocation1 [shape = 'u32[144,128]{1,0:T(1,128)}', space=vmem, size = 0x12000, scoped, tag = 'internal scratch']
  %s0 = inlined_call_operand.hbm [shape: f32[8,128], index: 0, kind: input, shape index: {}]
  %s1 = inlined_call_operand.hbm [shape: f32[128,256], index: 1, kind: input, shape index: {}]
  %s2 = inlined_call_operand.vmem [shape: f32[1,256], index: 2, kind: input, shape index: {}]
  %s3 = inlined_call_operand.hbm [shape: f32[256,256], index: 3, kind: input, shape index: {}]
  %s4 = inlined_call_operand.vmem [shape: f32[1,256], index: 4, kind: input, shape index: {}]
  %s5 = inlined_call_operand.hbm [shape: f32[256,640], index: 5, kind: input, shape index: {}]
  %s6 = inlined_call_operand.vmem [shape: f32[1,640], index: 6, kind: input, shape index: {}]
  %s7 = inlined_call_operand.hbm [shape: f32[640,256], index: 7, kind: input, shape index: {}]
  %s8 = inlined_call_operand.vmem [shape: f32[1,256], index: 8, kind: input, shape index: {}]
  %s9 = inlined_call_operand.hbm [shape: f32[8,256], index: 9, kind: output, shape index: {}]
  %s10 = sld [smem:[#allocation0]]
  $region66: #{tpu_custom_call.1} parent=0
    _
  %s12 = ssub.s32 1, %s10
  %s13 = scalar_select 0, %s12, %s10
  $region1: #{tpu_custom_call.1} parent=0
    #allocation2 [shape = 'u8[4096]{0}', space=vmem, size = 0x1000, scoped, tag = 'input window, operand 0, single buffered']
    #allocation3 [shape = 's32[1]{0}', space=sflag, size = 0x4, scoped, tag = 'scoped memory for tpu_custom_call.1']
    #allocation4 [shape = 's32[1]{0}', space=sflag, size = 0x4, scoped, tag = 'scoped memory for tpu_custom_call.1']
    #allocation5 [shape = 'u8[131072]{0}', space=vmem, size = 0x20000, scoped, tag = 'input window, operand 1, single buffered']
    #allocation6 [shape = 's32[1]{0}', space=sflag, size = 0x4, scoped, tag = 'scoped memory for tpu_custom_call.1']
    #allocation7 [shape = 'u8[262144]{0}', space=vmem, size = 0x40000, scoped, tag = 'input window, operand 3, single buffered']
    #allocation8 [shape = 'u8[655360]{0}', space=vmem, size = 0xa0000, scoped, tag = 'input window, operand 5, single buffered']
    #allocation9 [shape = 's32[1]{0}', space=sflag, size = 0x4, scoped, tag = 'scoped memory for tpu_custom_call.1']
    #allocation10 [shape = 'u8[655360]{0}', space=vmem, size = 0xa0000, scoped, tag = 'input window, operand 7, single buffered']
    #allocation11 [shape = 'u8[8192]{0}', space=vmem, size = 0x2000, scoped, tag = 'output window, operand 0, single buffered']
    %14 = vsyncpa [#allocation3], 0
    %15 = vsyncpa [#allocation6], 0
    %16 = vsyncpa [#allocation9], 0
    %17 = vsyncpa [#allocation4], 0
    // Predicated region
    $region2: #{tpu_custom_call.1} parent=1 // pred_check
      _
    $region3: #{tpu_custom_call.1} parent=1 // pred_check_branch
      %19 = sbr.rel (0) target = $region5
    $region4: #{tpu_custom_call.1} parent=1 // pred_region
      %s21 = ssub.s32 128, 128
      %22 = vsyncadd [#allocation3], %s21
      %s24 = sshll.u32 [#allocation2], 4
      %s25 = int_to_ptr.vmem [resolvable:$true] %s24
      %27 = dma.hbm_to_vmem [thread:$0]  %s0, 128, %s25, [#allocation3]
    $region5: #{tpu_custom_call.1} parent=1 // pred_fallthru
      _
    // Predicated region
    $region6: #{tpu_custom_call.1} parent=1 // pred_check
      _
    $region7: #{tpu_custom_call.1} parent=1 // pred_check_branch
      %29 = sbr.rel (0) target = $region9
    $region8: #{tpu_custom_call.1} parent=1 // pred_region
      %s31 = ssub.s32 4096, 4096
      %32 = vsyncadd [#allocation6], %s31
      %s33 = sshll.u32 [#allocation5], 4
      %s34 = int_to_ptr.vmem [resolvable:$true] %s33
      %39 = dma.hbm_to_vmem [thread:$0]  %s1, 4096, %s34, [#allocation6], 256, 256, 16
    $region9: #{tpu_custom_call.1} parent=1 // pred_fallthru
      _
    // Predicated region
    $region10: #{tpu_custom_call.1} parent=1 // pred_check
      _
    $region11: #{tpu_custom_call.1} parent=1 // pred_check_branch
      %41 = sbr.rel (0) target = $region13
    $region12: #{tpu_custom_call.1} parent=1 // pred_region
      _
    $region13: #{tpu_custom_call.1} parent=1 // pred_fallthru
      _
    // Predicated region
    $region14: #{tpu_custom_call.1} parent=1 // pred_check
      _
    $region15: #{tpu_custom_call.1} parent=1 // pred_check_branch
      %43 = sbr.rel (0) target = $region17
    $region16: #{tpu_custom_call.1} parent=1 // pred_region
      %s45 = ssub.s32 8192, 8192
      %46 = vsyncadd [#allocation6], %s45
      %s47 = sshll.u32 [#allocation7], 4
      %s48 = int_to_ptr.vmem [resolvable:$true] %s47
      %53 = dma.hbm_to_vmem [thread:$0]  %s3, 8192, %s48, [#allocation6], 256, 256, 16
    $region17: #{tpu_custom_call.1} parent=1 // pred_fallthru
      _
    // Predicated region
    $region18: #{tpu_custom_call.1} parent=1 // pred_check
      _
    $region19: #{tpu_custom_call.1} parent=1 // pred_check_branch
      %55 = sbr.rel (0) target = $region21
    $region20: #{tpu_custom_call.1} parent=1 // pred_region
      _
    $region21: #{tpu_custom_call.1} parent=1 // pred_fallthru
      _
    // Predicated region
    $region22: #{tpu_custom_call.1} parent=1 // pred_check
      _
    $region23: #{tpu_custom_call.1} parent=1 // pred_check_branch
      %57 = sbr.rel (0) target = $region25
    $region24: #{tpu_custom_call.1} parent=1 // pred_region
      %s59 = ssub.s32 20480, 20480
      %60 = vsyncadd [#allocation9], %s59
      %s61 = sshll.u32 [#allocation8], 4
      %s62 = int_to_ptr.vmem [resolvable:$true] %s61
      %67 = dma.hbm_to_vmem [thread:$0]  %s5, 20480, %s62, [#allocation9], 640, 640, 40
    $region25: #{tpu_custom_call.1} parent=1 // pred_fallthru
      _
    // Predicated region
    $region26: #{tpu_custom_call.1} parent=1 // pred_check
      _
    $region27: #{tpu_custom_call.1} parent=1 // pred_check_branch
      %69 = sbr.rel (0) target = $region29
    $region28: #{tpu_custom_call.1} parent=1 // pred_region
      _
    $region29: #{tpu_custom_call.1} parent=1 // pred_fallthru
      _
    // Predicated region
    $region30: #{tpu_custom_call.1} parent=1 // pred_check
      _
    $region31: #{tpu_custom_call.1} parent=1 // pred_check_branch
      %71 = sbr.rel (0) target = $region33
    $region32: #{tpu_custom_call.1} parent=1 // pred_region
      %s73 = ssub.s32 20480, 20480
      %74 = vsyncadd [#allocation9], %s73
      %s75 = sshll.u32 [#allocation10], 4
      %s76 = int_to_ptr.vmem [resolvable:$true] %s75
      %81 = dma.hbm_to_vmem [thread:$0]  %s7, 20480, %s76, [#allocation9], 256, 256, 16
    $region33: #{tpu_custom_call.1} parent=1 // pred_fallthru
      _
    // Predicated region
    $region34: #{tpu_custom_call.1} parent=1 // pred_check
      _
    $region35: #{tpu_custom_call.1} parent=1 // pred_check_branch
      %83 = sbr.rel (0) target = $region37
    $region36: #{tpu_custom_call.1} parent=1 // pred_region
      _
    $region37: #{tpu_custom_call.1} parent=1 // pred_fallthru
      _
    // Predicated region
    $region38: #{tpu_custom_call.1} parent=1 // pred_check
      _
    $region39: #{tpu_custom_call.1} parent=1 // pred_check_branch
      %85 = sbr.rel (0) target = $region41
    $region40: #{tpu_custom_call.1} parent=1 // pred_region
      %86 = dma.done [#allocation3], 128
    $region41: #{tpu_custom_call.1} parent=1 // pred_fallthru
      _
    // Predicated region
    $region42: #{tpu_custom_call.1} parent=1 // pred_check
      _
    $region43: #{tpu_custom_call.1} parent=1 // pred_check_branch
      %88 = sbr.rel (0) target = $region45
    $region44: #{tpu_custom_call.1} parent=1 // pred_region
      %89 = dma.done [#allocation6], 4096
    $region45: #{tpu_custom_call.1} parent=1 // pred_fallthru
      _
    // Predicated region
    $region46: #{tpu_custom_call.1} parent=1 // pred_check
      _
    $region47: #{tpu_custom_call.1} parent=1 // pred_check_branch
      %91 = sbr.rel (0) target = $region49
    $region48: #{tpu_custom_call.1} parent=1 // pred_region
      %92 = dma.done [#allocation6], 8192
    $region49: #{tpu_custom_call.1} parent=1 // pred_fallthru
      _
    // Predicated region
    $region50: #{tpu_custom_call.1} parent=1 // pred_check
      _
    $region51: #{tpu_custom_call.1} parent=1 // pred_check_branch
      %94 = sbr.rel (0) target = $region53
    $region52: #{tpu_custom_call.1} parent=1 // pred_region
      %95 = dma.done [#allocation9], 20480
    $region53: #{tpu_custom_call.1} parent=1 // pred_fallthru
      _
    // Predicated region
    $region54: #{tpu_custom_call.1} parent=1 // pred_check
      _
    $region55: #{tpu_custom_call.1} parent=1 // pred_check_branch
      %97 = sbr.rel (0) target = $region57
    $region56: #{tpu_custom_call.1} parent=1 // pred_region
      %98 = dma.done [#allocation9], 20480
    $region57: #{tpu_custom_call.1} parent=1 // pred_fallthru
      _
    %v99 = vld [vmem:[#allocation2] sm:$0xff]
    %v100 = vld [vmem:[#allocation5] sm:$0xff]
    %v101 = vld [vmem:[#allocation5 + $0x8] sm:$0xff]
    %v102 = vld [vmem:[#allocation5 + $0x10] sm:$0xff]
    %v103 = vld [vmem:[#allocation5 + $0x18] sm:$0xff]
    %v104 = vld [vmem:[#allocation5 + $0x20] sm:$0xff]
    %v105 = vld [vmem:[#allocation5 + $0x28] sm:$0xff]
    %v106 = vld [vmem:[#allocation5 + $0x30] sm:$0xff]
    %v107 = vld [vmem:[#allocation5 + $0x38] sm:$0xff]
    %v108 = vld [vmem:[#allocation5 + $0x40] sm:$0xff]
    %v109 = vld [vmem:[#allocation5 + $0x48] sm:$0xff]
    %v110 = vld [vmem:[#allocation5 + $0x50] sm:$0xff]
    %v111 = vld [vmem:[#allocation5 + $0x58] sm:$0xff]
    %v112 = vld [vmem:[#allocation5 + $0x60] sm:$0xff]
    %v113 = vld [vmem:[#allocation5 + $0x68] sm:$0xff]
    %v114 = vld [vmem:[#allocation5 + $0x70] sm:$0xff]
    %v115 = vld [vmem:[#allocation5 + $0x78] sm:$0xff]
    %v116 = vld [vmem:[#allocation5 + $0x80] sm:$0xff]
    %v117 = vld [vmem:[#allocation5 + $0x88] sm:$0xff]
    %v118 = vld [vmem:[#allocation5 + $0x90] sm:$0xff]
    %v119 = vld [vmem:[#allocation5 + $0x98] sm:$0xff]
    %v120 = vld [vmem:[#allocation5 + $0xa0] sm:$0xff]
    %v121 = vld [vmem:[#allocation5 + $0xa8] sm:$0xff]
    %v122 = vld [vmem:[#allocation5 + $0xb0] sm:$0xff]
    %v123 = vld [vmem:[#allocation5 + $0xb8] sm:$0xff]
    %v124 = vld [vmem:[#allocation5 + $0xc0] sm:$0xff]
    %v125 = vld [vmem:[#allocation5 + $0xc8] sm:$0xff]
    %v126 = vld [vmem:[#allocation5 + $0xd0] sm:$0xff]
    %v127 = vld [vmem:[#allocation5 + $0xd8] sm:$0xff]
    %v128 = vld [vmem:[#allocation5 + $0xe0] sm:$0xff]
    %v129 = vld [vmem:[#allocation5 + $0xe8] sm:$0xff]
    %v130 = vld [vmem:[#allocation5 + $0xf0] sm:$0xff]
    %v131 = vld [vmem:[#allocation5 + $0xf8] sm:$0xff]
    %v132 = vld [vmem:[%s2] sm:$0x3]
    %v134 = vlaneseq
    %v135 = vshrl.u32 %v134, 7
    %v136 = vsub.s32 0, %v135
    %v137 = vrot.slane %v132, %v136
    %v138 = vlaneseq
    %v139 = vshrl.u32 %v138, 7
    %v140 = vsub.s32 1, %v139
    %v141 = vrot.slane %v132, %v140
    %144 = vmatprep.subr.mxu0 %v131
    %145 = vmatpush1.msra.mxu0 %v130
    %146 = vmatprep.subr.mxu0 %v129
    %147 = vmatpush1.msra.mxu0 %v128
    %148 = vmatprep.subr.mxu0 %v127
    %149 = vmatpush1.msra.mxu0 %v126
    %150 = vmatprep.subr.mxu0 %v125
    %151 = vmatpush1.msra.mxu0 %v124
    %152 = vmatprep.subr.mxu0 %v123
    %153 = vmatpush1.msra.mxu0 %v122
    %154 = vmatprep.subr.mxu0 %v121
    %155 = vmatpush1.msra.mxu0 %v120
    %156 = vmatprep.subr.mxu0 %v119
    %157 = vmatpush1.msra.mxu0 %v118
    %158 = vmatprep.subr.mxu0 %v117
    %159 = vmatpush1.msra.mxu0 %v116
    %160 = vmatprep.subr.mxu0 %v115
    %161 = vmatpush1.msra.mxu0 %v114
    %162 = vmatprep.subr.mxu0 %v113
    %163 = vmatpush1.msra.mxu0 %v112
    %164 = vmatprep.subr.mxu0 %v111
    %165 = vmatpush1.msra.mxu0 %v110
    %166 = vmatprep.subr.mxu0 %v109
    %167 = vmatpush1.msra.mxu0 %v108
    %168 = vmatprep.subr.mxu0 %v107
    %169 = vmatpush1.msra.mxu0 %v106
    %170 = vmatprep.subr.mxu0 %v105
    %171 = vmatpush1.msra.mxu0 %v104
    %172 = vmatprep.subr.mxu0 %v103
    %173 = vmatpush1.msra.mxu0 %v102
    %174 = vmatprep.subr.mxu0 %v101
    %175 = vmatpush1.msra.mxu0 %v100
    %176 = vmatprep.subr.mxu0 0.0
    %177 = vmatpush2.msra.mxu0 0.0
    %178 = vmatprep.subr.mxu0 0.0
    %179 = vmatpush2.msra.mxu0 0.0
    %180 = vmatprep.subr.mxu0 0.0
    %181 = vmatpush2.msra.mxu0 0.0
    %182 = vmatprep.subr.mxu0 0.0
    %183 = vmatpush2.msra.mxu0 0.0
    %184 = vmatprep.subr.mxu0 0.0
    %185 = vmatpush2.msra.mxu0 0.0
    %186 = vmatprep.subr.mxu0 0.0
    %187 = vmatpush2.msra.mxu0 0.0
    %188 = vmatprep.subr.mxu0 0.0
    %189 = vmatpush2.msra.mxu0 0.0
    %190 = vmatprep.subr.mxu0 0.0
    %191 = vmatpush2.msra.mxu0 0.0
    %192 = vmatprep.subr.mxu0 0.0
    %193 = vmatpush2.msra.mxu0 0.0
    %194 = vmatprep.subr.mxu0 0.0
    %195 = vmatpush2.msra.mxu0 0.0
    %196 = vmatprep.subr.mxu0 0.0
    %197 = vmatpush2.msra.mxu0 0.0
    %198 = vmatprep.subr.mxu0 0.0
    %199 = vmatpush2.msra.mxu0 0.0
    %200 = vmatprep.subr.mxu0 0.0
    %201 = vmatpush2.msra.mxu0 0.0
    %202 = vmatprep.subr.mxu0 0.0
    %203 = vmatpush2.msra.mxu0 0.0
    %204 = vmatprep.subr.mxu0 0.0
    %205 = vmatpush2.msra.mxu0 0.0
    %206 = vmatprep.subr.mxu0 0.0
    %207 = vmatpush2.msra.mxu0 0.0
    %208 = vmatprep.mubr.f32.mxu0 0.0
    %209 = vmatmul.mubr.f32.gmra.mxu0 %v99
    %v210 = vpop.f32.mrf.mxu0
    %v211 = vadd.f32 %v137, %v210
    %v212 = vpop.f32.mrf.mxu0
    %v213 = vadd.f32 %v141, %v212
    %214 = vdwg.mxu0
    %v215 = vmax.f32 %v211, 0.0
    %v216 = vmax.f32 %v213, 0.0
    %v217 = vld [vmem:[#allocation7] sm:$0xff]
    %v218 = vld [vmem:[#allocation7 + $0x8] sm:$0xff]
    %v219 = vld [vmem:[#allocation7 + $0x10] sm:$0xff]
    %v220 = vld [vmem:[#allocation7 + $0x18] sm:$0xff]
    %v221 = vld [vmem:[#allocation7 + $0x20] sm:$0xff]
    %v222 = vld [vmem:[#allocation7 + $0x28] sm:$0xff]
    %v223 = vld [vmem:[#allocation7 + $0x30] sm:$0xff]
    %v224 = vld [vmem:[#allocation7 + $0x38] sm:$0xff]
    %v225 = vld [vmem:[#allocation7 + $0x40] sm:$0xff]
    %v226 = vld [vmem:[#allocation7 + $0x48] sm:$0xff]
    %v227 = vld [vmem:[#allocation7 + $0x50] sm:$0xff]
    %v228 = vld [vmem:[#allocation7 + $0x58] sm:$0xff]
    %v229 = vld [vmem:[#allocation7 + $0x60] sm:$0xff]
    %v230 = vld [vmem:[#allocation7 + $0x68] sm:$0xff]
    %v231 = vld [vmem:[#allocation7 + $0x70] sm:$0xff]
    %v232 = vld [vmem:[#allocation7 + $0x78] sm:$0xff]
    %v233 = vld [vmem:[#allocation7 + $0x80] sm:$0xff]
    %v234 = vld [vmem:[#allocation7 + $0x88] sm:$0xff]
    %v235 = vld [vmem:[#allocation7 + $0x90] sm:$0xff]
    %v236 = vld [vmem:[#allocation7 + $0x98] sm:$0xff]
    %v237 = vld [vmem:[#allocation7 + $0xa0] sm:$0xff]
    %v238 = vld [vmem:[#allocation7 + $0xa8] sm:$0xff]
    %v239 = vld [vmem:[#allocation7 + $0xb0] sm:$0xff]
    %v240 = vld [vmem:[#allocation7 + $0xb8] sm:$0xff]
    %v241 = vld [vmem:[#allocation7 + $0xc0] sm:$0xff]
    %v242 = vld [vmem:[#allocation7 + $0xc8] sm:$0xff]
    %v243 = vld [vmem:[#allocation7 + $0xd0] sm:$0xff]
    %v244 = vld [vmem:[#allocation7 + $0xd8] sm:$0xff]
    %v245 = vld [vmem:[#allocation7 + $0xe0] sm:$0xff]
    %v246 = vld [vmem:[#allocation7 + $0xe8] sm:$0xff]
    %v247 = vld [vmem:[#allocation7 + $0xf0] sm:$0xff]
    %v248 = vld [vmem:[#allocation7 + $0xf8] sm:$0xff]
    %v249 = vld [vmem:[#allocation7 + $0x100] sm:$0xff]
    %v250 = vld [vmem:[#allocation7 + $0x108] sm:$0xff]
    %v251 = vld [vmem:[#allocation7 + $0x110] sm:$0xff]
    %v252 = vld [vmem:[#allocation7 + $0x118] sm:$0xff]
    %v253 = vld [vmem:[#allocation7 + $0x120] sm:$0xff]
    %v254 = vld [vmem:[#allocation7 + $0x128] sm:$0xff]
    %v255 = vld [vmem:[#allocation7 + $0x130] sm:$0xff]
    %v256 = vld [vmem:[#allocation7 + $0x138] sm:$0xff]
    %v257 = vld [vmem:[#allocation7 + $0x140] sm:$0xff]
    %v258 = vld [vmem:[#allocation7 + $0x148] sm:$0xff]
    %v259 = vld [vmem:[#allocation7 + $0x150] sm:$0xff]
    %v260 = vld [vmem:[#allocation7 + $0x158] sm:$0xff]
    %v261 = vld [vmem:[#allocation7 + $0x160] sm:$0xff]
    %v262 = vld [vmem:[#allocation7 + $0x168] sm:$0xff]
    %v263 = vld [vmem:[#allocation7 + $0x170] sm:$0xff]
    %v264 = vld [vmem:[#allocation7 + $0x178] sm:$0xff]
    %v265 = vld [vmem:[#allocation7 + $0x180] sm:$0xff]
    %v266 = vld [vmem:[#allocation7 + $0x188] sm:$0xff]
    %v267 = vld [vmem:[#allocation7 + $0x190] sm:$0xff]
    %v268 = vld [vmem:[#allocation7 + $0x198] sm:$0xff]
    %v269 = vld [vmem:[#allocation7 + $0x1a0] sm:$0xff]
    %v270 = vld [vmem:[#allocation7 + $0x1a8] sm:$0xff]
    %v271 = vld [vmem:[#allocation7 + $0x1b0] sm:$0xff]
    %v272 = vld [vmem:[#allocation7 + $0x1b8] sm:$0xff]
    %v273 = vld [vmem:[#allocation7 + $0x1c0] sm:$0xff]
    %v274 = vld [vmem:[#allocation7 + $0x1c8] sm:$0xff]
    %v275 = vld [vmem:[#allocation7 + $0x1d0] sm:$0xff]
    %v276 = vld [vmem:[#allocation7 + $0x1d8] sm:$0xff]
    %v277 = vld [vmem:[#allocation7 + $0x1e0] sm:$0xff]
    %v278 = vld [vmem:[#allocation7 + $0x1e8] sm:$0xff]
    %v279 = vld [vmem:[#allocation7 + $0x1f0] sm:$0xff]
    %v280 = vld [vmem:[#allocation7 + $0x1f8] sm:$0xff]
    %v281 = vld [vmem:[%s4] sm:$0x3]
    %v283 = vlaneseq
    %v284 = vshrl.u32 %v283, 7
    %v285 = vsub.s32 0, %v284
    %v286 = vrot.slane %v281, %v285
    %v287 = vlaneseq
    %v288 = vshrl.u32 %v287, 7
    %v289 = vsub.s32 1, %v288
    %v290 = vrot.slane %v281, %v289
    %293 = vmatprep.subr.mxu0 %v248
    %294 = vmatpush1.msra.mxu0 %v247
    %295 = vmatprep.subr.mxu0 %v246
    %296 = vmatpush1.msra.mxu0 %v245
    %297 = vmatprep.subr.mxu0 %v244
    %298 = vmatpush1.msra.mxu0 %v243
    %299 = vmatprep.subr.mxu0 %v242
    %300 = vmatpush1.msra.mxu0 %v241
    %301 = vmatprep.subr.mxu0 %v240
    %302 = vmatpush1.msra.mxu0 %v239
    %303 = vmatprep.subr.mxu0 %v238
    %304 = vmatpush1.msra.mxu0 %v237
    %305 = vmatprep.subr.mxu0 %v236
    %306 = vmatpush1.msra.mxu0 %v235
    %307 = vmatprep.subr.mxu0 %v234
    %308 = vmatpush1.msra.mxu0 %v233
    %309 = vmatprep.subr.mxu0 %v232
    %310 = vmatpush1.msra.mxu0 %v231
    %311 = vmatprep.subr.mxu0 %v230
    %312 = vmatpush1.msra.mxu0 %v229
    %313 = vmatprep.subr.mxu0 %v228
    %314 = vmatpush1.msra.mxu0 %v227
    %315 = vmatprep.subr.mxu0 %v226
    %316 = vmatpush1.msra.mxu0 %v225
    %317 = vmatprep.subr.mxu0 %v224
    %318 = vmatpush1.msra.mxu0 %v223
    %319 = vmatprep.subr.mxu0 %v222
    %320 = vmatpush1.msra.mxu0 %v221
    %321 = vmatprep.subr.mxu0 %v220
    %322 = vmatpush1.msra.mxu0 %v219
    %323 = vmatprep.subr.mxu0 %v218
    %324 = vmatpush1.msra.mxu0 %v217
    %325 = vmatprep.subr.mxu0 %v280
    %326 = vmatpush2.msra.mxu0 %v279
    %327 = vmatprep.subr.mxu0 %v278
    %328 = vmatpush2.msra.mxu0 %v277
    %329 = vmatprep.subr.mxu0 %v276
    %330 = vmatpush2.msra.mxu0 %v275
    %331 = vmatprep.subr.mxu0 %v274
    %332 = vmatpush2.msra.mxu0 %v273
    %333 = vmatprep.subr.mxu0 %v272
    %334 = vmatpush2.msra.mxu0 %v271
    %335 = vmatprep.subr.mxu0 %v270
    %336 = vmatpush2.msra.mxu0 %v269
    %337 = vmatprep.subr.mxu0 %v268
    %338 = vmatpush2.msra.mxu0 %v267
    %339 = vmatprep.subr.mxu0 %v266
    %340 = vmatpush2.msra.mxu0 %v265
    %341 = vmatprep.subr.mxu0 %v264
    %342 = vmatpush2.msra.mxu0 %v263
    %343 = vmatprep.subr.mxu0 %v262
    %344 = vmatpush2.msra.mxu0 %v261
    %345 = vmatprep.subr.mxu0 %v260
    %346 = vmatpush2.msra.mxu0 %v259
    %347 = vmatprep.subr.mxu0 %v258
    %348 = vmatpush2.msra.mxu0 %v257
    %349 = vmatprep.subr.mxu0 %v256
    %350 = vmatpush2.msra.mxu0 %v255
    %351 = vmatprep.subr.mxu0 %v254
    %352 = vmatpush2.msra.mxu0 %v253
    %353 = vmatprep.subr.mxu0 %v252
    %354 = vmatpush2.msra.mxu0 %v251
    %355 = vmatprep.subr.mxu0 %v250
    %356 = vmatpush2.msra.mxu0 %v249
    %357 = vmatprep.mubr.f32.mxu0 %v216
    %358 = vmatmul.mubr.f32.gmra.mxu0 %v215
    %v359 = vpop.f32.mrf.mxu0
    %v360 = vadd.f32 %v286, %v359
    %v361 = vpop.f32.mrf.mxu0
    %v362 = vadd.f32 %v290, %v361
    %363 = vdwg.mxu0
    %v364 = vmax.f32 %v360, 0.0
    %v365 = vmax.f32 %v362, 0.0
    %v366 = vld [vmem:[#allocation8] sm:$0xff]
    %v367 = vld [vmem:[#allocation8 + $0x8] sm:$0xff]
    %v368 = vld [vmem:[#allocation8 + $0x10] sm:$0xff]
    %v369 = vld [vmem:[#allocation8 + $0x18] sm:$0xff]
    %v370 = vld [vmem:[#allocation8 + $0x20] sm:$0xff]
    %v371 = vld [vmem:[#allocation8 + $0x28] sm:$0xff]
    %v372 = vld [vmem:[#allocation8 + $0x30] sm:$0xff]
    %v373 = vld [vmem:[#allocation8 + $0x38] sm:$0xff]
    %v374 = vld [vmem:[#allocation8 + $0x40] sm:$0xff]
    %v375 = vld [vmem:[#allocation8 + $0x48] sm:$0xff]
    %v376 = vld [vmem:[#allocation8 + $0x50] sm:$0xff]
    %v377 = vld [vmem:[#allocation8 + $0x58] sm:$0xff]
    %v378 = vld [vmem:[#allocation8 + $0x60] sm:$0xff]
    %v379 = vld [vmem:[#allocation8 + $0x68] sm:$0xff]
    %v380 = vld [vmem:[#allocation8 + $0x70] sm:$0xff]
    %v381 = vld [vmem:[#allocation8 + $0x78] sm:$0xff]
    %v382 = vld [vmem:[#allocation8 + $0x80] sm:$0xff]
    %v383 = vld [vmem:[#allocation8 + $0x88] sm:$0xff]
    %v384 = vld [vmem:[#allocation8 + $0x90] sm:$0xff]
    %v385 = vld [vmem:[#allocation8 + $0x98] sm:$0xff]
    %v386 = vld [vmem:[#allocation8 + $0xa0] sm:$0xff]
    %v387 = vld [vmem:[#allocation8 + $0xa8] sm:$0xff]
    %v388 = vld [vmem:[#allocation8 + $0xb0] sm:$0xff]
    %v389 = vld [vmem:[#allocation8 + $0xb8] sm:$0xff]
    %v390 = vld [vmem:[#allocation8 + $0xc0] sm:$0xff]
    %v391 = vld [vmem:[#allocation8 + $0xc8] sm:$0xff]
    %v392 = vld [vmem:[#allocation8 + $0xd0] sm:$0xff]
    %v393 = vld [vmem:[#allocation8 + $0xd8] sm:$0xff]
    %v394 = vld [vmem:[#allocation8 + $0xe0] sm:$0xff]
    %v395 = vld [vmem:[#allocation8 + $0xe8] sm:$0xff]
    %v396 = vld [vmem:[#allocation8 + $0xf0] sm:$0xff]
    %v397 = vld [vmem:[#allocation8 + $0xf8] sm:$0xff]
    %v398 = vld [vmem:[#allocation8 + $0x100] sm:$0xff]
    %v399 = vld [vmem:[#allocation8 + $0x108] sm:$0xff]
    %v400 = vld [vmem:[#allocation8 + $0x110] sm:$0xff]
    %v401 = vld [vmem:[#allocation8 + $0x118] sm:$0xff]
    %v402 = vld [vmem:[#allocation8 + $0x120] sm:$0xff]
    %v403 = vld [vmem:[#allocation8 + $0x128] sm:$0xff]
    %v404 = vld [vmem:[#allocation8 + $0x130] sm:$0xff]
    %v405 = vld [vmem:[#allocation8 + $0x138] sm:$0xff]
    %v406 = vld [vmem:[#allocation8 + $0x140] sm:$0xff]
    %v407 = vld [vmem:[#allocation8 + $0x148] sm:$0xff]
    %v408 = vld [vmem:[#allocation8 + $0x150] sm:$0xff]
    %v409 = vld [vmem:[#allocation8 + $0x158] sm:$0xff]
    %v410 = vld [vmem:[#allocation8 + $0x160] sm:$0xff]
    %v411 = vld [vmem:[#allocation8 + $0x168] sm:$0xff]
    %v412 = vld [vmem:[#allocation8 + $0x170] sm:$0xff]
    %v413 = vld [vmem:[#allocation8 + $0x178] sm:$0xff]
    %v414 = vld [vmem:[#allocation8 + $0x180] sm:$0xff]
    %v415 = vld [vmem:[#allocation8 + $0x188] sm:$0xff]
    %v416 = vld [vmem:[#allocation8 + $0x190] sm:$0xff]
    %v417 = vld [vmem:[#allocation8 + $0x198] sm:$0xff]
    %v418 = vld [vmem:[#allocation8 + $0x1a0] sm:$0xff]
    %v419 = vld [vmem:[#allocation8 + $0x1a8] sm:$0xff]
    %v420 = vld [vmem:[#allocation8 + $0x1b0] sm:$0xff]
    %v421 = vld [vmem:[#allocation8 + $0x1b8] sm:$0xff]
    %v422 = vld [vmem:[#allocation8 + $0x1c0] sm:$0xff]
    %v423 = vld [vmem:[#allocation8 + $0x1c8] sm:$0xff]
    %v424 = vld [vmem:[#allocation8 + $0x1d0] sm:$0xff]
    %v425 = vld [vmem:[#allocation8 + $0x1d8] sm:$0xff]
    %v426 = vld [vmem:[#allocation8 + $0x1e0] sm:$0xff]
    %v427 = vld [vmem:[#allocation8 + $0x1e8] sm:$0xff]
    %v428 = vld [vmem:[#allocation8 + $0x1f0] sm:$0xff]
    %v429 = vld [vmem:[#allocation8 + $0x1f8] sm:$0xff]
    %v430 = vld [vmem:[#allocation8 + $0x200] sm:$0xff]
    %v431 = vld [vmem:[#allocation8 + $0x208] sm:$0xff]
    %v432 = vld [vmem:[#allocation8 + $0x210] sm:$0xff]
    %v433 = vld [vmem:[#allocation8 + $0x218] sm:$0xff]
    %v434 = vld [vmem:[#allocation8 + $0x220] sm:$0xff]
    %v435 = vld [vmem:[#allocation8 + $0x228] sm:$0xff]
    %v436 = vld [vmem:[#allocation8 + $0x230] sm:$0xff]
    %v437 = vld [vmem:[#allocation8 + $0x238] sm:$0xff]
    %v438 = vld [vmem:[#allocation8 + $0x240] sm:$0xff]
    %v439 = vld [vmem:[#allocation8 + $0x248] sm:$0xff]
    %v440 = vld [vmem:[#allocation8 + $0x250] sm:$0xff]
    %v441 = vld [vmem:[#allocation8 + $0x258] sm:$0xff]
    %v442 = vld [vmem:[#allocation8 + $0x260] sm:$0xff]
    %v443 = vld [vmem:[#allocation8 + $0x268] sm:$0xff]
    %v444 = vld [vmem:[#allocation8 + $0x270] sm:$0xff]
    %v445 = vld [vmem:[#allocation8 + $0x278] sm:$0xff]
    %v446 = vld [vmem:[#allocation8 + $0x280] sm:$0xff]
    %v447 = vld [vmem:[#allocation8 + $0x288] sm:$0xff]
    %v448 = vld [vmem:[#allocation8 + $0x290] sm:$0xff]
    %v449 = vld [vmem:[#allocation8 + $0x298] sm:$0xff]
    %v450 = vld [vmem:[#allocation8 + $0x2a0] sm:$0xff]
    %v451 = vld [vmem:[#allocation8 + $0x2a8] sm:$0xff]
    %v452 = vld [vmem:[#allocation8 + $0x2b0] sm:$0xff]
    %v453 = vld [vmem:[#allocation8 + $0x2b8] sm:$0xff]
    %v454 = vld [vmem:[#allocation8 + $0x2c0] sm:$0xff]
    %v455 = vld [vmem:[#allocation8 + $0x2c8] sm:$0xff]
    %v456 = vld [vmem:[#allocation8 + $0x2d0] sm:$0xff]
    %v457 = vld [vmem:[#allocation8 + $0x2d8] sm:$0xff]
    %v458 = vld [vmem:[#allocation8 + $0x2e0] sm:$0xff]
    %v459 = vld [vmem:[#allocation8 + $0x2e8] sm:$0xff]
    %v460 = vld [vmem:[#allocation8 + $0x2f0] sm:$0xff]
    %v461 = vld [vmem:[#allocation8 + $0x2f8] sm:$0xff]
    %v462 = vld [vmem:[#allocation8 + $0x300] sm:$0xff]
    %v463 = vld [vmem:[#allocation8 + $0x308] sm:$0xff]
    %v464 = vld [vmem:[#allocation8 + $0x310] sm:$0xff]
    %v465 = vld [vmem:[#allocation8 + $0x318] sm:$0xff]
    %v466 = vld [vmem:[#allocation8 + $0x320] sm:$0xff]
    %v467 = vld [vmem:[#allocation8 + $0x328] sm:$0xff]
    %v468 = vld [vmem:[#allocation8 + $0x330] sm:$0xff]
    %v469 = vld [vmem:[#allocation8 + $0x338] sm:$0xff]
    %v470 = vld [vmem:[#allocation8 + $0x340] sm:$0xff]
    %v471 = vld [vmem:[#allocation8 + $0x348] sm:$0xff]
    %v472 = vld [vmem:[#allocation8 + $0x350] sm:$0xff]
    %v473 = vld [vmem:[#allocation8 + $0x358] sm:$0xff]
    %v474 = vld [vmem:[#allocation8 + $0x360] sm:$0xff]
    %v475 = vld [vmem:[#allocation8 + $0x368] sm:$0xff]
    %v476 = vld [vmem:[#allocation8 + $0x370] sm:$0xff]
    %v477 = vld [vmem:[#allocation8 + $0x378] sm:$0xff]
    %v478 = vld [vmem:[#allocation8 + $0x380] sm:$0xff]
    %v479 = vld [vmem:[#allocation8 + $0x388] sm:$0xff]
    %v480 = vld [vmem:[#allocation8 + $0x390] sm:$0xff]
    %v481 = vld [vmem:[#allocation8 + $0x398] sm:$0xff]
    %v482 = vld [vmem:[#allocation8 + $0x3a0] sm:$0xff]
    %v483 = vld [vmem:[#allocation8 + $0x3a8] sm:$0xff]
    %v484 = vld [vmem:[#allocation8 + $0x3b0] sm:$0xff]
    %v485 = vld [vmem:[#allocation8 + $0x3b8] sm:$0xff]
    %v486 = vld [vmem:[#allocation8 + $0x3c0] sm:$0xff]
    %v487 = vld [vmem:[#allocation8 + $0x3c8] sm:$0xff]
    %v488 = vld [vmem:[#allocation8 + $0x3d0] sm:$0xff]
    %v489 = vld [vmem:[#allocation8 + $0x3d8] sm:$0xff]
    %v490 = vld [vmem:[#allocation8 + $0x3e0] sm:$0xff]
    %v491 = vld [vmem:[#allocation8 + $0x3e8] sm:$0xff]
    %v492 = vld [vmem:[#allocation8 + $0x3f0] sm:$0xff]
    %v493 = vld [vmem:[#allocation8 + $0x3f8] sm:$0xff]
    %v494 = vld [vmem:[#allocation8 + $0x400] sm:$0xff]
    %v495 = vld [vmem:[#allocation8 + $0x408] sm:$0xff]
    %v496 = vld [vmem:[#allocation8 + $0x410] sm:$0xff]
    %v497 = vld [vmem:[#allocation8 + $0x418] sm:$0xff]
    %v498 = vld [vmem:[#allocation8 + $0x420] sm:$0xff]
    %v499 = vld [vmem:[#allocation8 + $0x428] sm:$0xff]
    %v500 = vld [vmem:[#allocation8 + $0x430] sm:$0xff]
    %v501 = vld [vmem:[#allocation8 + $0x438] sm:$0xff]
    %v502 = vld [vmem:[#allocation8 + $0x440] sm:$0xff]
    %v503 = vld [vmem:[#allocation8 + $0x448] sm:$0xff]
    %v504 = vld [vmem:[#allocation8 + $0x450] sm:$0xff]
    %v505 = vld [vmem:[#allocation8 + $0x458] sm:$0xff]
    %v506 = vld [vmem:[#allocation8 + $0x460] sm:$0xff]
    %v507 = vld [vmem:[#allocation8 + $0x468] sm:$0xff]
    %v508 = vld [vmem:[#allocation8 + $0x470] sm:$0xff]
    %v509 = vld [vmem:[#allocation8 + $0x478] sm:$0xff]
    %v510 = vld [vmem:[#allocation8 + $0x480] sm:$0xff]
    %v511 = vld [vmem:[#allocation8 + $0x488] sm:$0xff]
    %v512 = vld [vmem:[#allocation8 + $0x490] sm:$0xff]
    %v513 = vld [vmem:[#allocation8 + $0x498] sm:$0xff]
    %v514 = vld [vmem:[#allocation8 + $0x4a0] sm:$0xff]
    %v515 = vld [vmem:[#allocation8 + $0x4a8] sm:$0xff]
    %v516 = vld [vmem:[#allocation8 + $0x4b0] sm:$0xff]
    %v517 = vld [vmem:[#allocation8 + $0x4b8] sm:$0xff]
    %v518 = vld [vmem:[#allocation8 + $0x4c0] sm:$0xff]
    %v519 = vld [vmem:[#allocation8 + $0x4c8] sm:$0xff]
    %v520 = vld [vmem:[#allocation8 + $0x4d0] sm:$0xff]
    %v521 = vld [vmem:[#allocation8 + $0x4d8] sm:$0xff]
    %v522 = vld [vmem:[#allocation8 + $0x4e0] sm:$0xff]
    %v523 = vld [vmem:[#allocation8 + $0x4e8] sm:$0xff]
    %v524 = vld [vmem:[#allocation8 + $0x4f0] sm:$0xff]
    %v525 = vld [vmem:[#allocation8 + $0x4f8] sm:$0xff]
    %v526 = vld [vmem:[%s6] sm:$0x1f]
    %v528 = vlaneseq
    %v529 = vshrl.u32 %v528, 7
    %v530 = vsub.s32 0, %v529
    %v531 = vrot.slane %v526, %v530
    %v532 = vlaneseq
    %v533 = vshrl.u32 %v532, 7
    %v534 = vsub.s32 1, %v533
    %v535 = vrot.slane %v526, %v534
    %v536 = vlaneseq
    %v537 = vshrl.u32 %v536, 7
    %v538 = vsub.s32 2, %v537
    %v539 = vrot.slane %v526, %v538
    %v540 = vlaneseq
    %v541 = vshrl.u32 %v540, 7
    %v542 = vsub.s32 3, %v541
    %v543 = vrot.slane %v526, %v542
    %v544 = vlaneseq
    %v545 = vshrl.u32 %v544, 7
    %v546 = vsub.s32 4, %v545
    %v547 = vrot.slane %v526, %v546
    %553 = vmatprep.subr.mxu0 %v442
    %554 = vmatpush1.msra.mxu0 %v441
    %555 = vmatprep.subr.mxu0 %v437
    %556 = vmatpush1.msra.mxu0 %v436
    %557 = vmatprep.subr.mxu0 %v432
    %558 = vmatpush1.msra.mxu0 %v431
    %559 = vmatprep.subr.mxu0 %v427
    %560 = vmatpush1.msra.mxu0 %v426
    %561 = vmatprep.subr.mxu0 %v422
    %562 = vmatpush1.msra.mxu0 %v421
    %563 = vmatprep.subr.mxu0 %v417
    %564 = vmatpush1.msra.mxu0 %v416
    %565 = vmatprep.subr.mxu0 %v412
    %566 = vmatpush1.msra.mxu0 %v411
    %567 = vmatprep.subr.mxu0 %v407
    %568 = vmatpush1.msra.mxu0 %v406
    %569 = vmatprep.subr.mxu0 %v402
    %570 = vmatpush1.msra.mxu0 %v401
    %571 = vmatprep.subr.mxu0 %v397
    %572 = vmatpush1.msra.mxu0 %v396
    %573 = vmatprep.subr.mxu0 %v392
    %574 = vmatpush1.msra.mxu0 %v391
    %575 = vmatprep.subr.mxu0 %v387
    %576 = vmatpush1.msra.mxu0 %v386
    %577 = vmatprep.subr.mxu0 %v382
    %578 = vmatpush1.msra.mxu0 %v381
    %579 = vmatprep.subr.mxu0 %v377
    %580 = vmatpush1.msra.mxu0 %v376
    %581 = vmatprep.subr.mxu0 %v372
    %582 = vmatpush1.msra.mxu0 %v371
    %583 = vmatprep.subr.mxu0 %v367
    %584 = vmatpush1.msra.mxu0 %v366
    %585 = vmatprep.subr.mxu0 %v522
    %586 = vmatpush2.msra.mxu0 %v521
    %587 = vmatprep.subr.mxu0 %v517
    %588 = vmatpush2.msra.mxu0 %v516
    %589 = vmatprep.subr.mxu0 %v512
    %590 = vmatpush2.msra.mxu0 %v511
    %591 = vmatprep.subr.mxu0 %v507
    %592 = vmatpush2.msra.mxu0 %v506
    %593 = vmatprep.subr.mxu0 %v502
    %594 = vmatpush2.msra.mxu0 %v501
    %595 = vmatprep.subr.mxu0 %v497
    %596 = vmatpush2.msra.mxu0 %v496
    %597 = vmatprep.subr.mxu0 %v492
    %598 = vmatpush2.msra.mxu0 %v491
    %599 = vmatprep.subr.mxu0 %v487
    %600 = vmatpush2.msra.mxu0 %v486
    %601 = vmatprep.subr.mxu0 %v482
    %602 = vmatpush2.msra.mxu0 %v481
    %603 = vmatprep.subr.mxu0 %v477
    %604 = vmatpush2.msra.mxu0 %v476
    %605 = vmatprep.subr.mxu0 %v472
    %606 = vmatpush2.msra.mxu0 %v471
    %607 = vmatprep.subr.mxu0 %v467
    %608 = vmatpush2.msra.mxu0 %v466
    %609 = vmatprep.subr.mxu0 %v462
    %610 = vmatpush2.msra.mxu0 %v461
    %611 = vmatprep.subr.mxu0 %v457
    %612 = vmatpush2.msra.mxu0 %v456
    %613 = vmatprep.subr.mxu0 %v452
    %614 = vmatpush2.msra.mxu0 %v451
    %615 = vmatprep.subr.mxu0 %v447
    %616 = vmatpush2.msra.mxu0 %v446
    %617 = vmatprep.mubr.f32.mxu0 %v365
    %618 = vmatmul.mubr.f32.gmra.mxu0 %v364
    %v619 = vpop.f32.mrf.mxu0
    %v620 = vadd.f32 %v531, %v619
    %v621 = vpop.f32.mrf.mxu0
    %v622 = vadd.f32 %v535, %v621
    %623 = vdwg.mxu0
    %624 = vmatprep.subr.mxu0 %v444
    %625 = vmatpush1.msra.mxu0 %v443
    %626 = vmatprep.subr.mxu0 %v439
    %627 = vmatpush1.msra.mxu0 %v438
    %628 = vmatprep.subr.mxu0 %v434
    %629 = vmatpush1.msra.mxu0 %v433
    %630 = vmatprep.subr.mxu0 %v429
    %631 = vmatpush1.msra.mxu0 %v428
    %632 = vmatprep.subr.mxu0 %v424
    %633 = vmatpush1.msra.mxu0 %v423
    %634 = vmatprep.subr.mxu0 %v419
    %635 = vmatpush1.msra.mxu0 %v418
    %636 = vmatprep.subr.mxu0 %v414
    %637 = vmatpush1.msra.mxu0 %v413
    %638 = vmatprep.subr.mxu0 %v409
    %639 = vmatpush1.msra.mxu0 %v408
    %640 = vmatprep.subr.mxu0 %v404
    %641 = vmatpush1.msra.mxu0 %v403
    %642 = vmatprep.subr.mxu0 %v399
    %643 = vmatpush1.msra.mxu0 %v398
    %644 = vmatprep.subr.mxu0 %v394
    %645 = vmatpush1.msra.mxu0 %v393
    %646 = vmatprep.subr.mxu0 %v389
    %647 = vmatpush1.msra.mxu0 %v388
    %648 = vmatprep.subr.mxu0 %v384
    %649 = vmatpush1.msra.mxu0 %v383
    %650 = vmatprep.subr.mxu0 %v379
    %651 = vmatpush1.msra.mxu0 %v378
    %652 = vmatprep.subr.mxu0 %v374
    %653 = vmatpush1.msra.mxu0 %v373
    %654 = vmatprep.subr.mxu0 %v369
    %655 = vmatpush1.msra.mxu0 %v368
    %656 = vmatprep.subr.mxu0 %v524
    %657 = vmatpush2.msra.mxu0 %v523
    %658 = vmatprep.subr.mxu0 %v519
    %659 = vmatpush2.msra.mxu0 %v518
    %660 = vmatprep.subr.mxu0 %v514
    %661 = vmatpush2.msra.mxu0 %v513
    %662 = vmatprep.subr.mxu0 %v509
    %663 = vmatpush2.msra.mxu0 %v508
    %664 = vmatprep.subr.mxu0 %v504
    %665 = vmatpush2.msra.mxu0 %v503
    %666 = vmatprep.subr.mxu0 %v499
    %667 = vmatpush2.msra.mxu0 %v498
    %668 = vmatprep.subr.mxu0 %v494
    %669 = vmatpush2.msra.mxu0 %v493
    %670 = vmatprep.subr.mxu0 %v489
    %671 = vmatpush2.msra.mxu0 %v488
    %672 = vmatprep.subr.mxu0 %v484
    %673 = vmatpush2.msra.mxu0 %v483
    %674 = vmatprep.subr.mxu0 %v479
    %675 = vmatpush2.msra.mxu0 %v478
    %676 = vmatprep.subr.mxu0 %v474
    %677 = vmatpush2.msra.mxu0 %v473
    %678 = vmatprep.subr.mxu0 %v469
    %679 = vmatpush2.msra.mxu0 %v468
    %680 = vmatprep.subr.mxu0 %v464
    %681 = vmatpush2.msra.mxu0 %v463
    %682 = vmatprep.subr.mxu0 %v459
    %683 = vmatpush2.msra.mxu0 %v458
    %684 = vmatprep.subr.mxu0 %v454
    %685 = vmatpush2.msra.mxu0 %v453
    %686 = vmatprep.subr.mxu0 %v449
    %687 = vmatpush2.msra.mxu0 %v448
    %688 = vmatprep.mubr.f32.mxu0 %v365
    %689 = vmatmul.mubr.f32.gmra.mxu0 %v364
    %v690 = vpop.f32.mrf.mxu0
    %v691 = vadd.f32 %v539, %v690
    %v692 = vpop.f32.mrf.mxu0
    %v693 = vadd.f32 %v543, %v692
    %694 = vdwg.mxu0
    %695 = vmatprep.subr.mxu0 0.0
    %696 = vmatpush1.msra.mxu0 %v445
    %697 = vmatprep.subr.mxu0 0.0
    %698 = vmatpush1.msra.mxu0 %v440
    %699 = vmatprep.subr.mxu0 0.0
    %700 = vmatpush1.msra.mxu0 %v435
    %701 = vmatprep.subr.mxu0 0.0
    %702 = vmatpush1.msra.mxu0 %v430
    %703 = vmatprep.subr.mxu0 0.0
    %704 = vmatpush1.msra.mxu0 %v425
    %705 = vmatprep.subr.mxu0 0.0
    %706 = vmatpush1.msra.mxu0 %v420
    %707 = vmatprep.subr.mxu0 0.0
    %708 = vmatpush1.msra.mxu0 %v415
    %709 = vmatprep.subr.mxu0 0.0
    %710 = vmatpush1.msra.mxu0 %v410
    %711 = vmatprep.subr.mxu0 0.0
    %712 = vmatpush1.msra.mxu0 %v405
    %713 = vmatprep.subr.mxu0 0.0
    %714 = vmatpush1.msra.mxu0 %v400
    %715 = vmatprep.subr.mxu0 0.0
    %716 = vmatpush1.msra.mxu0 %v395
    %717 = vmatprep.subr.mxu0 0.0
    %718 = vmatpush1.msra.mxu0 %v390
    %719 = vmatprep.subr.mxu0 0.0
    %720 = vmatpush1.msra.mxu0 %v385
    %721 = vmatprep.subr.mxu0 0.0
    %722 = vmatpush1.msra.mxu0 %v380
    %723 = vmatprep.subr.mxu0 0.0
    %724 = vmatpush1.msra.mxu0 %v375
    %725 = vmatprep.subr.mxu0 0.0
    %726 = vmatpush1.msra.mxu0 %v370
    %727 = vmatprep.subr.mxu0 0.0
    %728 = vmatpush2.msra.mxu0 %v525
    %729 = vmatprep.subr.mxu0 0.0
    %730 = vmatpush2.msra.mxu0 %v520
    %731 = vmatprep.subr.mxu0 0.0
    %732 = vmatpush2.msra.mxu0 %v515
    %733 = vmatprep.subr.mxu0 0.0
    %734 = vmatpush2.msra.mxu0 %v510
    %735 = vmatprep.subr.mxu0 0.0
    %736 = vmatpush2.msra.mxu0 %v505
    %737 = vmatprep.subr.mxu0 0.0
    %738 = vmatpush2.msra.mxu0 %v500
    %739 = vmatprep.subr.mxu0 0.0
    %740 = vmatpush2.msra.mxu0 %v495
    %741 = vmatprep.subr.mxu0 0.0
    %742 = vmatpush2.msra.mxu0 %v490
    %743 = vmatprep.subr.mxu0 0.0
    %744 = vmatpush2.msra.mxu0 %v485
    %745 = vmatprep.subr.mxu0 0.0
    %746 = vmatpush2.msra.mxu0 %v480
    %747 = vmatprep.subr.mxu0 0.0
    %748 = vmatpush2.msra.mxu0 %v475
    %749 = vmatprep.subr.mxu0 0.0
    %750 = vmatpush2.msra.mxu0 %v470
    %751 = vmatprep.subr.mxu0 0.0
    %752 = vmatpush2.msra.mxu0 %v465
    %753 = vmatprep.subr.mxu0 0.0
    %754 = vmatpush2.msra.mxu0 %v460
    %755 = vmatprep.subr.mxu0 0.0
    %756 = vmatpush2.msra.mxu0 %v455
    %757 = vmatprep.subr.mxu0 0.0
    %758 = vmatpush2.msra.mxu0 %v450
    %759 = vmatprep.mubr.f32.mxu0 %v365
    %760 = vmatmul.mubr.f32.gmra.mxu0 %v364
    %v761 = vpop.f32.mrf.mxu0
    %v762 = vadd.f32 %v547, %v761
    %v763 = vpop.f32.mrf.mxu0
    %764 = vdwg.mxu0
    %v765 = vmax.f32 %v620, 0.0
    %v766 = vmax.f32 %v622, 0.0
    %v767 = vmax.f32 %v691, 0.0
    %v768 = vmax.f32 %v693, 0.0
    %v769 = vmax.f32 %v762, 0.0
    %v770 = vld [vmem:[#allocation10] sm:$0xff]
    %v771 = vld [vmem:[#allocation10 + $0x8] sm:$0xff]
    %v772 = vld [vmem:[#allocation10 + $0x10] sm:$0xff]
    %v773 = vld [vmem:[#allocation10 + $0x18] sm:$0xff]
    %v774 = vld [vmem:[#allocation10 + $0x20] sm:$0xff]
    %v775 = vld [vmem:[#allocation10 + $0x28] sm:$0xff]
    %v776 = vld [vmem:[#allocation10 + $0x30] sm:$0xff]
    %v777 = vld [vmem:[#allocation10 + $0x38] sm:$0xff]
    %v778 = vld [vmem:[#allocation10 + $0x40] sm:$0xff]
    %v779 = vld [vmem:[#allocation10 + $0x48] sm:$0xff]
    %v780 = vld [vmem:[#allocation10 + $0x50] sm:$0xff]
    %v781 = vld [vmem:[#allocation10 + $0x58] sm:$0xff]
    %v782 = vld [vmem:[#allocation10 + $0x60] sm:$0xff]
    %v783 = vld [vmem:[#allocation10 + $0x68] sm:$0xff]
    %v784 = vld [vmem:[#allocation10 + $0x70] sm:$0xff]
    %v785 = vld [vmem:[#allocation10 + $0x78] sm:$0xff]
    %v786 = vld [vmem:[#allocation10 + $0x80] sm:$0xff]
    %v787 = vld [vmem:[#allocation10 + $0x88] sm:$0xff]
    %v788 = vld [vmem:[#allocation10 + $0x90] sm:$0xff]
    %v789 = vld [vmem:[#allocation10 + $0x98] sm:$0xff]
    %v790 = vld [vmem:[#allocation10 + $0xa0] sm:$0xff]
    %v791 = vld [vmem:[#allocation10 + $0xa8] sm:$0xff]
    %v792 = vld [vmem:[#allocation10 + $0xb0] sm:$0xff]
    %v793 = vld [vmem:[#allocation10 + $0xb8] sm:$0xff]
    %v794 = vld [vmem:[#allocation10 + $0xc0] sm:$0xff]
    %v795 = vld [vmem:[#allocation10 + $0xc8] sm:$0xff]
    %v796 = vld [vmem:[#allocation10 + $0xd0] sm:$0xff]
    %v797 = vld [vmem:[#allocation10 + $0xd8] sm:$0xff]
    %v798 = vld [vmem:[#allocation10 + $0xe0] sm:$0xff]
    %v799 = vld [vmem:[#allocation10 + $0xe8] sm:$0xff]
    %v800 = vld [vmem:[#allocation10 + $0xf0] sm:$0xff]
    %v801 = vld [vmem:[#allocation10 + $0xf8] sm:$0xff]
    %v802 = vld [vmem:[#allocation10 + $0x100] sm:$0xff]
    %v803 = vld [vmem:[#allocation10 + $0x108] sm:$0xff]
    %v804 = vld [vmem:[#allocation10 + $0x110] sm:$0xff]
    %v805 = vld [vmem:[#allocation10 + $0x118] sm:$0xff]
    %v806 = vld [vmem:[#allocation10 + $0x120] sm:$0xff]
    %v807 = vld [vmem:[#allocation10 + $0x128] sm:$0xff]
    %v808 = vld [vmem:[#allocation10 + $0x130] sm:$0xff]
    %v809 = vld [vmem:[#allocation10 + $0x138] sm:$0xff]
    %v810 = vld [vmem:[#allocation10 + $0x140] sm:$0xff]
    %v811 = vld [vmem:[#allocation10 + $0x148] sm:$0xff]
    %v812 = vld [vmem:[#allocation10 + $0x150] sm:$0xff]
    %v813 = vld [vmem:[#allocation10 + $0x158] sm:$0xff]
    %v814 = vld [vmem:[#allocation10 + $0x160] sm:$0xff]
    %v815 = vld [vmem:[#allocation10 + $0x168] sm:$0xff]
    %v816 = vld [vmem:[#allocation10 + $0x170] sm:$0xff]
    %v817 = vld [vmem:[#allocation10 + $0x178] sm:$0xff]
    %v818 = vld [vmem:[#allocation10 + $0x180] sm:$0xff]
    %v819 = vld [vmem:[#allocation10 + $0x188] sm:$0xff]
    %v820 = vld [vmem:[#allocation10 + $0x190] sm:$0xff]
    %v821 = vld [vmem:[#allocation10 + $0x198] sm:$0xff]
    %v822 = vld [vmem:[#allocation10 + $0x1a0] sm:$0xff]
    %v823 = vld [vmem:[#allocation10 + $0x1a8] sm:$0xff]
    %v824 = vld [vmem:[#allocation10 + $0x1b0] sm:$0xff]
    %v825 = vld [vmem:[#allocation10 + $0x1b8] sm:$0xff]
    %v826 = vld [vmem:[#allocation10 + $0x1c0] sm:$0xff]
    %v827 = vld [vmem:[#allocation10 + $0x1c8] sm:$0xff]
    %v828 = vld [vmem:[#allocation10 + $0x1d0] sm:$0xff]
    %v829 = vld [vmem:[#allocation10 + $0x1d8] sm:$0xff]
    %v830 = vld [vmem:[#allocation10 + $0x1e0] sm:$0xff]
    %v831 = vld [vmem:[#allocation10 + $0x1e8] sm:$0xff]
    %v832 = vld [vmem:[#allocation10 + $0x1f0] sm:$0xff]
    %v833 = vld [vmem:[#allocation10 + $0x1f8] sm:$0xff]
    %v834 = vld [vmem:[#allocation10 + $0x200] sm:$0xff]
    %v835 = vld [vmem:[#allocation10 + $0x208] sm:$0xff]
    %v836 = vld [vmem:[#allocation10 + $0x210] sm:$0xff]
    %v837 = vld [vmem:[#allocation10 + $0x218] sm:$0xff]
    %v838 = vld [vmem:[#allocation10 + $0x220] sm:$0xff]
    %v839 = vld [vmem:[#allocation10 + $0x228] sm:$0xff]
    %v840 = vld [vmem:[#allocation10 + $0x230] sm:$0xff]
    %v841 = vld [vmem:[#allocation10 + $0x238] sm:$0xff]
    %v842 = vld [vmem:[#allocation10 + $0x240] sm:$0xff]
    %v843 = vld [vmem:[#allocation10 + $0x248] sm:$0xff]
    %v844 = vld [vmem:[#allocation10 + $0x250] sm:$0xff]
    %v845 = vld [vmem:[#allocation10 + $0x258] sm:$0xff]
    %v846 = vld [vmem:[#allocation10 + $0x260] sm:$0xff]
    %v847 = vld [vmem:[#allocation10 + $0x268] sm:$0xff]
    %v848 = vld [vmem:[#allocation10 + $0x270] sm:$0xff]
    %v849 = vld [vmem:[#allocation10 + $0x278] sm:$0xff]
    %v850 = vld [vmem:[#allocation10 + $0x280] sm:$0xff]
    %v851 = vld [vmem:[#allocation10 + $0x288] sm:$0xff]
    %v852 = vld [vmem:[#allocation10 + $0x290] sm:$0xff]
    %v853 = vld [vmem:[#allocation10 + $0x298] sm:$0xff]
    %v854 = vld [vmem:[#allocation10 + $0x2a0] sm:$0xff]
    %v855 = vld [vmem:[#allocation10 + $0x2a8] sm:$0xff]
    %v856 = vld [vmem:[#allocation10 + $0x2b0] sm:$0xff]
    %v857 = vld [vmem:[#allocation10 + $0x2b8] sm:$0xff]
    %v858 = vld [vmem:[#allocation10 + $0x2c0] sm:$0xff]
    %v859 = vld [vmem:[#allocation10 + $0x2c8] sm:$0xff]
    %v860 = vld [vmem:[#allocation10 + $0x2d0] sm:$0xff]
    %v861 = vld [vmem:[#allocation10 + $0x2d8] sm:$0xff]
    %v862 = vld [vmem:[#allocation10 + $0x2e0] sm:$0xff]
    %v863 = vld [vmem:[#allocation10 + $0x2e8] sm:$0xff]
    %v864 = vld [vmem:[#allocation10 + $0x2f0] sm:$0xff]
    %v865 = vld [vmem:[#allocation10 + $0x2f8] sm:$0xff]
    %v866 = vld [vmem:[#allocation10 + $0x300] sm:$0xff]
    %v867 = vld [vmem:[#allocation10 + $0x308] sm:$0xff]
    %v868 = vld [vmem:[#allocation10 + $0x310] sm:$0xff]
    %v869 = vld [vmem:[#allocation10 + $0x318] sm:$0xff]
    %v870 = vld [vmem:[#allocation10 + $0x320] sm:$0xff]
    %v871 = vld [vmem:[#allocation10 + $0x328] sm:$0xff]
    %v872 = vld [vmem:[#allocation10 + $0x330] sm:$0xff]
    %v873 = vld [vmem:[#allocation10 + $0x338] sm:$0xff]
    %v874 = vld [vmem:[#allocation10 + $0x340] sm:$0xff]
    %v875 = vld [vmem:[#allocation10 + $0x348] sm:$0xff]
    %v876 = vld [vmem:[#allocation10 + $0x350] sm:$0xff]
    %v877 = vld [vmem:[#allocation10 + $0x358] sm:$0xff]
    %v878 = vld [vmem:[#allocation10 + $0x360] sm:$0xff]
    %v879 = vld [vmem:[#allocation10 + $0x368] sm:$0xff]
    %v880 = vld [vmem:[#allocation10 + $0x370] sm:$0xff]
    %v881 = vld [vmem:[#allocation10 + $0x378] sm:$0xff]
    %v882 = vld [vmem:[#allocation10 + $0x380] sm:$0xff]
    %v883 = vld [vmem:[#allocation10 + $0x388] sm:$0xff]
    %v884 = vld [vmem:[#allocation10 + $0x390] sm:$0xff]
    %v885 = vld [vmem:[#allocation10 + $0x398] sm:$0xff]
    %v886 = vld [vmem:[#allocation10 + $0x3a0] sm:$0xff]
    %v887 = vld [vmem:[#allocation10 + $0x3a8] sm:$0xff]
    %v888 = vld [vmem:[#allocation10 + $0x3b0] sm:$0xff]
    %v889 = vld [vmem:[#allocation10 + $0x3b8] sm:$0xff]
    %v890 = vld [vmem:[#allocation10 + $0x3c0] sm:$0xff]
    %v891 = vld [vmem:[#allocation10 + $0x3c8] sm:$0xff]
    %v892 = vld [vmem:[#allocation10 + $0x3d0] sm:$0xff]
    %v893 = vld [vmem:[#allocation10 + $0x3d8] sm:$0xff]
    %v894 = vld [vmem:[#allocation10 + $0x3e0] sm:$0xff]
    %v895 = vld [vmem:[#allocation10 + $0x3e8] sm:$0xff]
    %v896 = vld [vmem:[#allocation10 + $0x3f0] sm:$0xff]
    %v897 = vld [vmem:[#allocation10 + $0x3f8] sm:$0xff]
    %v898 = vld [vmem:[#allocation10 + $0x400] sm:$0xff]
    %v899 = vld [vmem:[#allocation10 + $0x408] sm:$0xff]
    %v900 = vld [vmem:[#allocation10 + $0x410] sm:$0xff]
    %v901 = vld [vmem:[#allocation10 + $0x418] sm:$0xff]
    %v902 = vld [vmem:[#allocation10 + $0x420] sm:$0xff]
    %v903 = vld [vmem:[#allocation10 + $0x428] sm:$0xff]
    %v904 = vld [vmem:[#allocation10 + $0x430] sm:$0xff]
    %v905 = vld [vmem:[#allocation10 + $0x438] sm:$0xff]
    %v906 = vld [vmem:[#allocation10 + $0x440] sm:$0xff]
    %v907 = vld [vmem:[#allocation10 + $0x448] sm:$0xff]
    %v908 = vld [vmem:[#allocation10 + $0x450] sm:$0xff]
    %v909 = vld [vmem:[#allocation10 + $0x458] sm:$0xff]
    %v910 = vld [vmem:[#allocation10 + $0x460] sm:$0xff]
    %v911 = vld [vmem:[#allocation10 + $0x468] sm:$0xff]
    %v912 = vld [vmem:[#allocation10 + $0x470] sm:$0xff]
    %v913 = vld [vmem:[#allocation10 + $0x478] sm:$0xff]
    %v914 = vld [vmem:[#allocation10 + $0x480] sm:$0xff]
    %v915 = vld [vmem:[#allocation10 + $0x488] sm:$0xff]
    %v916 = vld [vmem:[#allocation10 + $0x490] sm:$0xff]
    %v917 = vld [vmem:[#allocation10 + $0x498] sm:$0xff]
    %v918 = vld [vmem:[#allocation10 + $0x4a0] sm:$0xff]
    %v919 = vld [vmem:[#allocation10 + $0x4a8] sm:$0xff]
    %v920 = vld [vmem:[#allocation10 + $0x4b0] sm:$0xff]
    %v921 = vld [vmem:[#allocation10 + $0x4b8] sm:$0xff]
    %v922 = vld [vmem:[#allocation10 + $0x4c0] sm:$0xff]
    %v923 = vld [vmem:[#allocation10 + $0x4c8] sm:$0xff]
    %v924 = vld [vmem:[#allocation10 + $0x4d0] sm:$0xff]
    %v925 = vld [vmem:[#allocation10 + $0x4d8] sm:$0xff]
    %v926 = vld [vmem:[#allocation10 + $0x4e0] sm:$0xff]
    %v927 = vld [vmem:[#allocation10 + $0x4e8] sm:$0xff]
    %v928 = vld [vmem:[#allocation10 + $0x4f0] sm:$0xff]
    %v929 = vld [vmem:[#allocation10 + $0x4f8] sm:$0xff]
    %v930 = vld [vmem:[%s8] sm:$0x3]
    %v932 = vlaneseq
    %v933 = vshrl.u32 %v932, 7
    %v934 = vsub.s32 0, %v933
    %v935 = vrot.slane %v930, %v934
    %v936 = vlaneseq
    %v937 = vshrl.u32 %v936, 7
    %v938 = vsub.s32 1, %v937
    %v939 = vrot.slane %v930, %v938
    %942 = vmatprep.subr.mxu0 %v801
    %943 = vmatpush1.msra.mxu0 %v800
    %944 = vmatprep.subr.mxu0 %v799
    %945 = vmatpush1.msra.mxu0 %v798
    %946 = vmatprep.subr.mxu0 %v797
    %947 = vmatpush1.msra.mxu0 %v796
    %948 = vmatprep.subr.mxu0 %v795
    %949 = vmatpush1.msra.mxu0 %v794
    %950 = vmatprep.subr.mxu0 %v793
    %951 = vmatpush1.msra.mxu0 %v792
    %952 = vmatprep.subr.mxu0 %v791
    %953 = vmatpush1.msra.mxu0 %v790
    %954 = vmatprep.subr.mxu0 %v789
    %955 = vmatpush1.msra.mxu0 %v788
    %956 = vmatprep.subr.mxu0 %v787
    %957 = vmatpush1.msra.mxu0 %v786
    %958 = vmatprep.subr.mxu0 %v785
    %959 = vmatpush1.msra.mxu0 %v784
    %960 = vmatprep.subr.mxu0 %v783
    %961 = vmatpush1.msra.mxu0 %v782
    %962 = vmatprep.subr.mxu0 %v781
    %963 = vmatpush1.msra.mxu0 %v780
    %964 = vmatprep.subr.mxu0 %v779
    %965 = vmatpush1.msra.mxu0 %v778
    %966 = vmatprep.subr.mxu0 %v777
    %967 = vmatpush1.msra.mxu0 %v776
    %968 = vmatprep.subr.mxu0 %v775
    %969 = vmatpush1.msra.mxu0 %v774
    %970 = vmatprep.subr.mxu0 %v773
    %971 = vmatpush1.msra.mxu0 %v772
    %972 = vmatprep.subr.mxu0 %v771
    %973 = vmatpush1.msra.mxu0 %v770
    %974 = vmatprep.subr.mxu0 %v833
    %975 = vmatpush2.msra.mxu0 %v832
    %976 = vmatprep.subr.mxu0 %v831
    %977 = vmatpush2.msra.mxu0 %v830
    %978 = vmatprep.subr.mxu0 %v829
    %979 = vmatpush2.msra.mxu0 %v828
    %980 = vmatprep.subr.mxu0 %v827
    %981 = vmatpush2.msra.mxu0 %v826
    %982 = vmatprep.subr.mxu0 %v825
    %983 = vmatpush2.msra.mxu0 %v824
    %984 = vmatprep.subr.mxu0 %v823
    %985 = vmatpush2.msra.mxu0 %v822
    %986 = vmatprep.subr.mxu0 %v821
    %987 = vmatpush2.msra.mxu0 %v820
    %988 = vmatprep.subr.mxu0 %v819
    %989 = vmatpush2.msra.mxu0 %v818
    %990 = vmatprep.subr.mxu0 %v817
    %991 = vmatpush2.msra.mxu0 %v816
    %992 = vmatprep.subr.mxu0 %v815
    %993 = vmatpush2.msra.mxu0 %v814
    %994 = vmatprep.subr.mxu0 %v813
    %995 = vmatpush2.msra.mxu0 %v812
    %996 = vmatprep.subr.mxu0 %v811
    %997 = vmatpush2.msra.mxu0 %v810
    %998 = vmatprep.subr.mxu0 %v809
    %999 = vmatpush2.msra.mxu0 %v808
    %1000 = vmatprep.subr.mxu0 %v807
    %1001 = vmatpush2.msra.mxu0 %v806
    %1002 = vmatprep.subr.mxu0 %v805
    %1003 = vmatpush2.msra.mxu0 %v804
    %1004 = vmatprep.subr.mxu0 %v803
    %1005 = vmatpush2.msra.mxu0 %v802
    %1006 = vmatprep.mubr.f32.mxu0 %v766
    %1007 = vmatmul.mubr.f32.gmra.mxu0 %v765
    %v1008 = vpop.f32.mrf.mxu0
    %v1009 = vadd.f32 %v935, %v1008
    %v1010 = vpop.f32.mrf.mxu0
    %v1011 = vadd.f32 %v939, %v1010
    %1012 = vdwg.mxu0
    %1013 = vmatprep.subr.mxu0 %v865
    %1014 = vmatpush1.msra.mxu0 %v864
    %1015 = vmatprep.subr.mxu0 %v863
    %1016 = vmatpush1.msra.mxu0 %v862
    %1017 = vmatprep.subr.mxu0 %v861
    %1018 = vmatpush1.msra.mxu0 %v860
    %1019 = vmatprep.subr.mxu0 %v859
    %1020 = vmatpush1.msra.mxu0 %v858
    %1021 = vmatprep.subr.mxu0 %v857
    %1022 = vmatpush1.msra.mxu0 %v856
    %1023 = vmatprep.subr.mxu0 %v855
    %1024 = vmatpush1.msra.mxu0 %v854
    %1025 = vmatprep.subr.mxu0 %v853
    %1026 = vmatpush1.msra.mxu0 %v852
    %1027 = vmatprep.subr.mxu0 %v851
    %1028 = vmatpush1.msra.mxu0 %v850
    %1029 = vmatprep.subr.mxu0 %v849
    %1030 = vmatpush1.msra.mxu0 %v848
    %1031 = vmatprep.subr.mxu0 %v847
    %1032 = vmatpush1.msra.mxu0 %v846
    %1033 = vmatprep.subr.mxu0 %v845
    %1034 = vmatpush1.msra.mxu0 %v844
    %1035 = vmatprep.subr.mxu0 %v843
    %1036 = vmatpush1.msra.mxu0 %v842
    %1037 = vmatprep.subr.mxu0 %v841
    %1038 = vmatpush1.msra.mxu0 %v840
    %1039 = vmatprep.subr.mxu0 %v839
    %1040 = vmatpush1.msra.mxu0 %v838
    %1041 = vmatprep.subr.mxu0 %v837
    %1042 = vmatpush1.msra.mxu0 %v836
    %1043 = vmatprep.subr.mxu0 %v835
    %1044 = vmatpush1.msra.mxu0 %v834
    %1045 = vmatprep.subr.mxu0 %v897
    %1046 = vmatpush2.msra.mxu0 %v896
    %1047 = vmatprep.subr.mxu0 %v895
    %1048 = vmatpush2.msra.mxu0 %v894
    %1049 = vmatprep.subr.mxu0 %v893
    %1050 = vmatpush2.msra.mxu0 %v892
    %1051 = vmatprep.subr.mxu0 %v891
    %1052 = vmatpush2.msra.mxu0 %v890
    %1053 = vmatprep.subr.mxu0 %v889
    %1054 = vmatpush2.msra.mxu0 %v888
    %1055 = vmatprep.subr.mxu0 %v887
    %1056 = vmatpush2.msra.mxu0 %v886
    %1057 = vmatprep.subr.mxu0 %v885
    %1058 = vmatpush2.msra.mxu0 %v884
    %1059 = vmatprep.subr.mxu0 %v883
    %1060 = vmatpush2.msra.mxu0 %v882
    %1061 = vmatprep.subr.mxu0 %v881
    %1062 = vmatpush2.msra.mxu0 %v880
    %1063 = vmatprep.subr.mxu0 %v879
    %1064 = vmatpush2.msra.mxu0 %v878
    %1065 = vmatprep.subr.mxu0 %v877
    %1066 = vmatpush2.msra.mxu0 %v876
    %1067 = vmatprep.subr.mxu0 %v875
    %1068 = vmatpush2.msra.mxu0 %v874
    %1069 = vmatprep.subr.mxu0 %v873
    %1070 = vmatpush2.msra.mxu0 %v872
    %1071 = vmatprep.subr.mxu0 %v871
    %1072 = vmatpush2.msra.mxu0 %v870
    %1073 = vmatprep.subr.mxu0 %v869
    %1074 = vmatpush2.msra.mxu0 %v868
    %1075 = vmatprep.subr.mxu0 %v867
    %1076 = vmatpush2.msra.mxu0 %v866
    %1077 = vmatprep.mubr.f32.mxu0 %v768
    %1078 = vmatmul.mubr.f32.gmra.mxu0 %v767
    %v1079 = vpop.f32.mrf.mxu0
    %v1080 = vadd.f32 %v1009, %v1079
    %v1081 = vpop.f32.mrf.mxu0
    %v1082 = vadd.f32 %v1011, %v1081
    %1083 = vdwg.mxu0
    %1084 = vmatprep.subr.mxu0 %v929
    %1085 = vmatpush1.msra.mxu0 %v928
    %1086 = vmatprep.subr.mxu0 %v927
    %1087 = vmatpush1.msra.mxu0 %v926
    %1088 = vmatprep.subr.mxu0 %v925
    %1089 = vmatpush1.msra.mxu0 %v924
    %1090 = vmatprep.subr.mxu0 %v923
    %1091 = vmatpush1.msra.mxu0 %v922
    %1092 = vmatprep.subr.mxu0 %v921
    %1093 = vmatpush1.msra.mxu0 %v920
    %1094 = vmatprep.subr.mxu0 %v919
    %1095 = vmatpush1.msra.mxu0 %v918
    %1096 = vmatprep.subr.mxu0 %v917
    %1097 = vmatpush1.msra.mxu0 %v916
    %1098 = vmatprep.subr.mxu0 %v915
    %1099 = vmatpush1.msra.mxu0 %v914
    %1100 = vmatprep.subr.mxu0 %v913
    %1101 = vmatpush1.msra.mxu0 %v912
    %1102 = vmatprep.subr.mxu0 %v911
    %1103 = vmatpush1.msra.mxu0 %v910
    %1104 = vmatprep.subr.mxu0 %v909
    %1105 = vmatpush1.msra.mxu0 %v908
    %1106 = vmatprep.subr.mxu0 %v907
    %1107 = vmatpush1.msra.mxu0 %v906
    %1108 = vmatprep.subr.mxu0 %v905
    %1109 = vmatpush1.msra.mxu0 %v904
    %1110 = vmatprep.subr.mxu0 %v903
    %1111 = vmatpush1.msra.mxu0 %v902
    %1112 = vmatprep.subr.mxu0 %v901
    %1113 = vmatpush1.msra.mxu0 %v900
    %1114 = vmatprep.subr.mxu0 %v899
    %1115 = vmatpush1.msra.mxu0 %v898
    %1116 = vmatprep.subr.mxu0 0.0
    %1117 = vmatpush2.msra.mxu0 0.0
    %1118 = vmatprep.subr.mxu0 0.0
    %1119 = vmatpush2.msra.mxu0 0.0
    %1120 = vmatprep.subr.mxu0 0.0
    %1121 = vmatpush2.msra.mxu0 0.0
    %1122 = vmatprep.subr.mxu0 0.0
    %1123 = vmatpush2.msra.mxu0 0.0
    %1124 = vmatprep.subr.mxu0 0.0
    %1125 = vmatpush2.msra.mxu0 0.0
    %1126 = vmatprep.subr.mxu0 0.0
    %1127 = vmatpush2.msra.mxu0 0.0
    %1128 = vmatprep.subr.mxu0 0.0
    %1129 = vmatpush2.msra.mxu0 0.0
    %1130 = vmatprep.subr.mxu0 0.0
    %1131 = vmatpush2.msra.mxu0 0.0
    %1132 = vmatprep.subr.mxu0 0.0
    %1133 = vmatpush2.msra.mxu0 0.0
    %1134 = vmatprep.subr.mxu0 0.0
    %1135 = vmatpush2.msra.mxu0 0.0
    %1136 = vmatprep.subr.mxu0 0.0
    %1137 = vmatpush2.msra.mxu0 0.0
    %1138 = vmatprep.subr.mxu0 0.0
    %1139 = vmatpush2.msra.mxu0 0.0
    %1140 = vmatprep.subr.mxu0 0.0
    %1141 = vmatpush2.msra.mxu0 0.0
    %1142 = vmatprep.subr.mxu0 0.0
    %1143 = vmatpush2.msra.mxu0 0.0
    %1144 = vmatprep.subr.mxu0 0.0
    %1145 = vmatpush2.msra.mxu0 0.0
    %1146 = vmatprep.subr.mxu0 0.0
    %1147 = vmatpush2.msra.mxu0 0.0
    %1148 = vmatprep.mubr.f32.mxu0 0.0
    %1149 = vmatmul.mubr.f32.gmra.mxu0 %v769
    %v1150 = vpop.f32.mrf.mxu0
    %v1151 = vadd.f32 %v1080, %v1150
    %v1152 = vpop.f32.mrf.mxu0
    %v1153 = vadd.f32 %v1082, %v1152
    %1154 = vdwg.mxu0
    %1155 = vst [vmem:[#allocation11] sm:$0xff] %v1151
    %1156 = vst [vmem:[#allocation11 + $0x8] sm:$0xff] %v1153
    // Predicated region
    $region58: #{tpu_custom_call.1} parent=1 // pred_check
      _
    $region59: #{tpu_custom_call.1} parent=1 // pred_check_branch
      %1158 = sbr.rel (0) target = $region61
    $region60: #{tpu_custom_call.1} parent=1 // pred_region
      %s1160 = ssub.s32 256, 256
      %1161 = vsyncadd [#allocation4], %s1160
      %s1163 = sshll.u32 [#allocation11], 4
      %s1164 = int_to_ptr.vmem [resolvable:$true] %s1163
      %1166 = dma.vmem_to_hbm [thread:$0]  %s1164, 256, %s9, [#allocation4]
    $region61: #{tpu_custom_call.1} parent=1 // pred_fallthru
      _
    // Predicated region
    $region62: #{tpu_custom_call.1} parent=1 // pred_check
      _
    $region63: #{tpu_custom_call.1} parent=1 // pred_check_branch
      %1168 = sbr.rel (0) target = $region65
    $region64: #{tpu_custom_call.1} parent=1 // pred_region
      %1169 = dma.done [#allocation4], 256
    $region65: #{tpu_custom_call.1} parent=1 // pred_fallthru
      _
    %1170 = vsyncpa [#allocation3], 1
    %1171 = vsyncpa [#allocation6], 1
    %1172 = vsyncpa [#allocation9], 1
    %1173 = vsyncpa [#allocation4], 1

// kernel: tpu_custom_call.1
$region0: #{tpu_custom_call.1}
  #allocation0 [shape = 'u32[]', space=smem, size = 0x4, offset = 0x4, fixed_abs, tag = 'smem constant byte address 0x4 - core index']
  #allocation1 [shape = 'u32[144,128]{1,0:T(1,128)}', space=vmem, size = 0x12000, scoped, tag = 'internal scratch']
  %s0 = inlined_call_operand.hbm [shape: f32[8,128], index: 0, kind: input, shape index: {}]
  %s1 = inlined_call_operand.hbm [shape: f32[128,256], index: 1, kind: input, shape index: {}]
  %s2 = inlined_call_operand.vmem [shape: f32[1,256], index: 2, kind: input, shape index: {}]
  %s3 = inlined_call_operand.hbm [shape: f32[256,256], index: 3, kind: input, shape index: {}]
  %s4 = inlined_call_operand.vmem [shape: f32[1,256], index: 4, kind: input, shape index: {}]
  %s5 = inlined_call_operand.hbm [shape: f32[256,640], index: 5, kind: input, shape index: {}]
  %s6 = inlined_call_operand.vmem [shape: f32[1,640], index: 6, kind: input, shape index: {}]
  %s7 = inlined_call_operand.hbm [shape: f32[640,256], index: 7, kind: input, shape index: {}]
  %s8 = inlined_call_operand.vmem [shape: f32[1,256], index: 8, kind: input, shape index: {}]
  %s9 = inlined_call_operand.hbm [shape: f32[8,256], index: 9, kind: output, shape index: {}]
  %s10 = sld [smem:[#allocation0]]
  $region66: #{tpu_custom_call.1} parent=0
    _
  %s12 = ssub.s32 1, %s10
  %s13 = scalar_select 0, %s12, %s10
  $region1: #{tpu_custom_call.1} parent=0
    #allocation2 [shape = 'u8[4096]{0}', space=vmem, size = 0x1000, scoped, tag = 'input window, operand 0, single buffered']
    #allocation3 [shape = 's32[1]{0}', space=sflag, size = 0x4, scoped, tag = 'scoped memory for tpu_custom_call.1']
    #allocation4 [shape = 's32[1]{0}', space=sflag, size = 0x4, scoped, tag = 'scoped memory for tpu_custom_call.1']
    #allocation5 [shape = 'u8[131072]{0}', space=vmem, size = 0x20000, scoped, tag = 'input window, operand 1, single buffered']
    #allocation6 [shape = 's32[1]{0}', space=sflag, size = 0x4, scoped, tag = 'scoped memory for tpu_custom_call.1']
    #allocation7 [shape = 'u8[262144]{0}', space=vmem, size = 0x40000, scoped, tag = 'input window, operand 3, single buffered']
    #allocation8 [shape = 'u8[655360]{0}', space=vmem, size = 0xa0000, scoped, tag = 'input window, operand 5, single buffered']
    #allocation9 [shape = 's32[1]{0}', space=sflag, size = 0x4, scoped, tag = 'scoped memory for tpu_custom_call.1']
    #allocation10 [shape = 'u8[655360]{0}', space=vmem, size = 0xa0000, scoped, tag = 'input window, operand 7, single buffered']
    #allocation11 [shape = 'u8[8192]{0}', space=vmem, size = 0x2000, scoped, tag = 'output window, operand 0, single buffered']
    %14 = vsyncpa [#allocation3], 0
    %15 = vsyncpa [#allocation6], 0
    %16 = vsyncpa [#allocation9], 0
    %17 = vsyncpa [#allocation4], 0
    // Predicated region
    $region2: #{tpu_custom_call.1} parent=1 // pred_check
      _
    $region3: #{tpu_custom_call.1} parent=1 // pred_check_branch
      %19 = sbr.rel (0) target = $region5
    $region4: #{tpu_custom_call.1} parent=1 // pred_region
      %s21 = ssub.s32 128, 128
      %22 = vsyncadd [#allocation3], %s21
      %s24 = sshll.u32 [#allocation2], 4
      %s25 = int_to_ptr.vmem [resolvable:$true] %s24
      %27 = dma.hbm_to_vmem [thread:$0]  %s0, 128, %s25, [#allocation3]
    $region5: #{tpu_custom_call.1} parent=1 // pred_fallthru
      _
    // Predicated region
    $region6: #{tpu_custom_call.1} parent=1 // pred_check
      _
    $region7: #{tpu_custom_call.1} parent=1 // pred_check_branch
      %29 = sbr.rel (0) target = $region9
    $region8: #{tpu_custom_call.1} parent=1 // pred_region
      %s31 = ssub.s32 4096, 4096
      %32 = vsyncadd [#allocation6], %s31
      %s33 = sshll.u32 [#allocation5], 4
      %s34 = int_to_ptr.vmem [resolvable:$true] %s33
      %39 = dma.hbm_to_vmem [thread:$0]  %s1, 4096, %s34, [#allocation6], 256, 256, 16
    $region9: #{tpu_custom_call.1} parent=1 // pred_fallthru
      _
    // Predicated region
    $region10: #{tpu_custom_call.1} parent=1 // pred_check
      _
    $region11: #{tpu_custom_call.1} parent=1 // pred_check_branch
      %41 = sbr.rel (0) target = $region13
    $region12: #{tpu_custom_call.1} parent=1 // pred_region
      _
    $region13: #{tpu_custom_call.1} parent=1 // pred_fallthru
      _
    // Predicated region
    $region14: #{tpu_custom_call.1} parent=1 // pred_check
      _
    $region15: #{tpu_custom_call.1} parent=1 // pred_check_branch
      %43 = sbr.rel (0) target = $region17
    $region16: #{tpu_custom_call.1} parent=1 // pred_region
      %s45 = ssub.s32 8192, 8192
      %46 = vsyncadd [#allocation6], %s45
      %s47 = sshll.u32 [#allocation7], 4
      %s48 = int_to_ptr.vmem [resolvable:$true] %s47
      %53 = dma.hbm_to_vmem [thread:$0]  %s3, 8192, %s48, [#allocation6], 256, 256, 16
    $region17: #{tpu_custom_call.1} parent=1 // pred_fallthru
      _
    // Predicated region
    $region18: #{tpu_custom_call.1} parent=1 // pred_check
      _
    $region19: #{tpu_custom_call.1} parent=1 // pred_check_branch
      %55 = sbr.rel (0) target = $region21
    $region20: #{tpu_custom_call.1} parent=1 // pred_region
      _
    $region21: #{tpu_custom_call.1} parent=1 // pred_fallthru
      _
    // Predicated region
    $region22: #{tpu_custom_call.1} parent=1 // pred_check
      _
    $region23: #{tpu_custom_call.1} parent=1 // pred_check_branch
      %57 = sbr.rel (0) target = $region25
    $region24: #{tpu_custom_call.1} parent=1 // pred_region
      %s59 = ssub.s32 20480, 20480
      %60 = vsyncadd [#allocation9], %s59
      %s61 = sshll.u32 [#allocation8], 4
      %s62 = int_to_ptr.vmem [resolvable:$true] %s61
      %67 = dma.hbm_to_vmem [thread:$0]  %s5, 20480, %s62, [#allocation9], 640, 640, 40
    $region25: #{tpu_custom_call.1} parent=1 // pred_fallthru
      _
    // Predicated region
    $region26: #{tpu_custom_call.1} parent=1 // pred_check
      _
    $region27: #{tpu_custom_call.1} parent=1 // pred_check_branch
      %69 = sbr.rel (0) target = $region29
    $region28: #{tpu_custom_call.1} parent=1 // pred_region
      _
    $region29: #{tpu_custom_call.1} parent=1 // pred_fallthru
      _
    // Predicated region
    $region30: #{tpu_custom_call.1} parent=1 // pred_check
      _
    $region31: #{tpu_custom_call.1} parent=1 // pred_check_branch
      %71 = sbr.rel (0) target = $region33
    $region32: #{tpu_custom_call.1} parent=1 // pred_region
      %s73 = ssub.s32 20480, 20480
      %74 = vsyncadd [#allocation9], %s73
      %s75 = sshll.u32 [#allocation10], 4
      %s76 = int_to_ptr.vmem [resolvable:$true] %s75
      %81 = dma.hbm_to_vmem [thread:$0]  %s7, 20480, %s76, [#allocation9], 256, 256, 16
    $region33: #{tpu_custom_call.1} parent=1 // pred_fallthru
      _
    // Predicated region
    $region34: #{tpu_custom_call.1} parent=1 // pred_check
      _
    $region35: #{tpu_custom_call.1} parent=1 // pred_check_branch
      %83 = sbr.rel (0) target = $region37
    $region36: #{tpu_custom_call.1} parent=1 // pred_region
      _
    $region37: #{tpu_custom_call.1} parent=1 // pred_fallthru
      _
    // Predicated region
    $region38: #{tpu_custom_call.1} parent=1 // pred_check
      _
    $region39: #{tpu_custom_call.1} parent=1 // pred_check_branch
      %85 = sbr.rel (0) target = $region41
    $region40: #{tpu_custom_call.1} parent=1 // pred_region
      %86 = dma.done [#allocation3], 128
    $region41: #{tpu_custom_call.1} parent=1 // pred_fallthru
      _
    // Predicated region
    $region42: #{tpu_custom_call.1} parent=1 // pred_check
      _
    $region43: #{tpu_custom_call.1} parent=1 // pred_check_branch
      %88 = sbr.rel (0) target = $region45
    $region44: #{tpu_custom_call.1} parent=1 // pred_region
      %89 = dma.done [#allocation6], 4096
    $region45: #{tpu_custom_call.1} parent=1 // pred_fallthru
      _
    // Predicated region
    $region46: #{tpu_custom_call.1} parent=1 // pred_check
      _
    $region47: #{tpu_custom_call.1} parent=1 // pred_check_branch
      %91 = sbr.rel (0) target = $region49
    $region48: #{tpu_custom_call.1} parent=1 // pred_region
      %92 = dma.done [#allocation6], 8192
    $region49: #{tpu_custom_call.1} parent=1 // pred_fallthru
      _
    // Predicated region
    $region50: #{tpu_custom_call.1} parent=1 // pred_check
      _
    $region51: #{tpu_custom_call.1} parent=1 // pred_check_branch
      %94 = sbr.rel (0) target = $region53
    $region52: #{tpu_custom_call.1} parent=1 // pred_region
      %95 = dma.done [#allocation9], 20480
    $region53: #{tpu_custom_call.1} parent=1 // pred_fallthru
      _
    // Predicated region
    $region54: #{tpu_custom_call.1} parent=1 // pred_check
      _
    $region55: #{tpu_custom_call.1} parent=1 // pred_check_branch
      %97 = sbr.rel (0) target = $region57
    $region56: #{tpu_custom_call.1} parent=1 // pred_region
      %98 = dma.done [#allocation9], 20480
    $region57: #{tpu_custom_call.1} parent=1 // pred_fallthru
      _
    %v99 = vld [vmem:[#allocation2] sm:$0xff]
    %v100 = vld [vmem:[#allocation5] sm:$0xff]
    %v101 = vld [vmem:[#allocation5 + $0x8] sm:$0xff]
    %v102 = vld [vmem:[#allocation5 + $0x10] sm:$0xff]
    %v103 = vld [vmem:[#allocation5 + $0x18] sm:$0xff]
    %v104 = vld [vmem:[#allocation5 + $0x20] sm:$0xff]
    %v105 = vld [vmem:[#allocation5 + $0x28] sm:$0xff]
    %v106 = vld [vmem:[#allocation5 + $0x30] sm:$0xff]
    %v107 = vld [vmem:[#allocation5 + $0x38] sm:$0xff]
    %v108 = vld [vmem:[#allocation5 + $0x40] sm:$0xff]
    %v109 = vld [vmem:[#allocation5 + $0x48] sm:$0xff]
    %v110 = vld [vmem:[#allocation5 + $0x50] sm:$0xff]
    %v111 = vld [vmem:[#allocation5 + $0x58] sm:$0xff]
    %v112 = vld [vmem:[#allocation5 + $0x60] sm:$0xff]
    %v113 = vld [vmem:[#allocation5 + $0x68] sm:$0xff]
    %v114 = vld [vmem:[#allocation5 + $0x70] sm:$0xff]
    %v115 = vld [vmem:[#allocation5 + $0x78] sm:$0xff]
    %v116 = vld [vmem:[#allocation5 + $0x80] sm:$0xff]
    %v117 = vld [vmem:[#allocation5 + $0x88] sm:$0xff]
    %v118 = vld [vmem:[#allocation5 + $0x90] sm:$0xff]
    %v119 = vld [vmem:[#allocation5 + $0x98] sm:$0xff]
    %v120 = vld [vmem:[#allocation5 + $0xa0] sm:$0xff]
    %v121 = vld [vmem:[#allocation5 + $0xa8] sm:$0xff]
    %v122 = vld [vmem:[#allocation5 + $0xb0] sm:$0xff]
    %v123 = vld [vmem:[#allocation5 + $0xb8] sm:$0xff]
    %v124 = vld [vmem:[#allocation5 + $0xc0] sm:$0xff]
    %v125 = vld [vmem:[#allocation5 + $0xc8] sm:$0xff]
    %v126 = vld [vmem:[#allocation5 + $0xd0] sm:$0xff]
    %v127 = vld [vmem:[#allocation5 + $0xd8] sm:$0xff]
    %v128 = vld [vmem:[#allocation5 + $0xe0] sm:$0xff]
    %v129 = vld [vmem:[#allocation5 + $0xe8] sm:$0xff]
    %v130 = vld [vmem:[#allocation5 + $0xf0] sm:$0xff]
    %v131 = vld [vmem:[#allocation5 + $0xf8] sm:$0xff]
    %v132 = vld [vmem:[%s2] sm:$0x3]
    %v134 = vlaneseq
    %v135 = vshrl.u32 %v134, 7
    %v136 = vsub.s32 0, %v135
    %v137 = vrot.slane %v132, %v136
    %v138 = vlaneseq
    %v139 = vshrl.u32 %v138, 7
    %v140 = vsub.s32 1, %v139
    %v141 = vrot.slane %v132, %v140
    %144 = vmatprep.subr.mxu0 %v131
    %145 = vmatpush1.msra.mxu0 %v130
    %146 = vmatprep.subr.mxu0 %v129
    %147 = vmatpush1.msra.mxu0 %v128
    %148 = vmatprep.subr.mxu0 %v127
    %149 = vmatpush1.msra.mxu0 %v126
    %150 = vmatprep.subr.mxu0 %v125
    %151 = vmatpush1.msra.mxu0 %v124
    %152 = vmatprep.subr.mxu0 %v123
    %153 = vmatpush1.msra.mxu0 %v122
    %154 = vmatprep.subr.mxu0 %v121
    %155 = vmatpush1.msra.mxu0 %v120
    %156 = vmatprep.subr.mxu0 %v119
    %157 = vmatpush1.msra.mxu0 %v118
    %158 = vmatprep.subr.mxu0 %v117
    %159 = vmatpush1.msra.mxu0 %v116
    %160 = vmatprep.subr.mxu0 %v115
    %161 = vmatpush1.msra.mxu0 %v114
    %162 = vmatprep.subr.mxu0 %v113
    %163 = vmatpush1.msra.mxu0 %v112
    %164 = vmatprep.subr.mxu0 %v111
    %165 = vmatpush1.msra.mxu0 %v110
    %166 = vmatprep.subr.mxu0 %v109
    %167 = vmatpush1.msra.mxu0 %v108
    %168 = vmatprep.subr.mxu0 %v107
    %169 = vmatpush1.msra.mxu0 %v106
    %170 = vmatprep.subr.mxu0 %v105
    %171 = vmatpush1.msra.mxu0 %v104
    %172 = vmatprep.subr.mxu0 %v103
    %173 = vmatpush1.msra.mxu0 %v102
    %174 = vmatprep.subr.mxu0 %v101
    %175 = vmatpush1.msra.mxu0 %v100
    %176 = vmatprep.subr.mxu0 0.0
    %177 = vmatpush2.msra.mxu0 0.0
    %178 = vmatprep.subr.mxu0 0.0
    %179 = vmatpush2.msra.mxu0 0.0
    %180 = vmatprep.subr.mxu0 0.0
    %181 = vmatpush2.msra.mxu0 0.0
    %182 = vmatprep.subr.mxu0 0.0
    %183 = vmatpush2.msra.mxu0 0.0
    %184 = vmatprep.subr.mxu0 0.0
    %185 = vmatpush2.msra.mxu0 0.0
    %186 = vmatprep.subr.mxu0 0.0
    %187 = vmatpush2.msra.mxu0 0.0
    %188 = vmatprep.subr.mxu0 0.0
    %189 = vmatpush2.msra.mxu0 0.0
    %190 = vmatprep.subr.mxu0 0.0
    %191 = vmatpush2.msra.mxu0 0.0
    %192 = vmatprep.subr.mxu0 0.0
    %193 = vmatpush2.msra.mxu0 0.0
    %194 = vmatprep.subr.mxu0 0.0
    %195 = vmatpush2.msra.mxu0 0.0
    %196 = vmatprep.subr.mxu0 0.0
    %197 = vmatpush2.msra.mxu0 0.0
    %198 = vmatprep.subr.mxu0 0.0
    %199 = vmatpush2.msra.mxu0 0.0
    %200 = vmatprep.subr.mxu0 0.0
    %201 = vmatpush2.msra.mxu0 0.0
    %202 = vmatprep.subr.mxu0 0.0
    %203 = vmatpush2.msra.mxu0 0.0
    %204 = vmatprep.subr.mxu0 0.0
    %205 = vmatpush2.msra.mxu0 0.0
    %206 = vmatprep.subr.mxu0 0.0
    %207 = vmatpush2.msra.mxu0 0.0
    %208 = vmatprep.mubr.f32.mxu0 0.0
    %209 = vmatmul.mubr.f32.gmra.mxu0 %v99
    %v210 = vpop.f32.mrf.mxu0
    %v211 = vadd.f32 %v137, %v210
    %v212 = vpop.f32.mrf.mxu0
    %v213 = vadd.f32 %v141, %v212
    %214 = vdwg.mxu0
    %v215 = vmax.f32 %v211, 0.0
    %v216 = vmax.f32 %v213, 0.0
    %v217 = vld [vmem:[#allocation7] sm:$0xff]
    %v218 = vld [vmem:[#allocation7 + $0x8] sm:$0xff]
    %v219 = vld [vmem:[#allocation7 + $0x10] sm:$0xff]
    %v220 = vld [vmem:[#allocation7 + $0x18] sm:$0xff]
    %v221 = vld [vmem:[#allocation7 + $0x20] sm:$0xff]
    %v222 = vld [vmem:[#allocation7 + $0x28] sm:$0xff]
    %v223 = vld [vmem:[#allocation7 + $0x30] sm:$0xff]
    %v224 = vld [vmem:[#allocation7 + $0x38] sm:$0xff]
    %v225 = vld [vmem:[#allocation7 + $0x40] sm:$0xff]
    %v226 = vld [vmem:[#allocation7 + $0x48] sm:$0xff]
    %v227 = vld [vmem:[#allocation7 + $0x50] sm:$0xff]
    %v228 = vld [vmem:[#allocation7 + $0x58] sm:$0xff]
    %v229 = vld [vmem:[#allocation7 + $0x60] sm:$0xff]
    %v230 = vld [vmem:[#allocation7 + $0x68] sm:$0xff]
    %v231 = vld [vmem:[#allocation7 + $0x70] sm:$0xff]
    %v232 = vld [vmem:[#allocation7 + $0x78] sm:$0xff]
    %v233 = vld [vmem:[#allocation7 + $0x80] sm:$0xff]
    %v234 = vld [vmem:[#allocation7 + $0x88] sm:$0xff]
    %v235 = vld [vmem:[#allocation7 + $0x90] sm:$0xff]
    %v236 = vld [vmem:[#allocation7 + $0x98] sm:$0xff]
    %v237 = vld [vmem:[#allocation7 + $0xa0] sm:$0xff]
    %v238 = vld [vmem:[#allocation7 + $0xa8] sm:$0xff]
    %v239 = vld [vmem:[#allocation7 + $0xb0] sm:$0xff]
    %v240 = vld [vmem:[#allocation7 + $0xb8] sm:$0xff]
    %v241 = vld [vmem:[#allocation7 + $0xc0] sm:$0xff]
    %v242 = vld [vmem:[#allocation7 + $0xc8] sm:$0xff]
    %v243 = vld [vmem:[#allocation7 + $0xd0] sm:$0xff]
    %v244 = vld [vmem:[#allocation7 + $0xd8] sm:$0xff]
    %v245 = vld [vmem:[#allocation7 + $0xe0] sm:$0xff]
    %v246 = vld [vmem:[#allocation7 + $0xe8] sm:$0xff]
    %v247 = vld [vmem:[#allocation7 + $0xf0] sm:$0xff]
    %v248 = vld [vmem:[#allocation7 + $0xf8] sm:$0xff]
    %v249 = vld [vmem:[#allocation7 + $0x100] sm:$0xff]
    %v250 = vld [vmem:[#allocation7 + $0x108] sm:$0xff]
    %v251 = vld [vmem:[#allocation7 + $0x110] sm:$0xff]
    %v252 = vld [vmem:[#allocation7 + $0x118] sm:$0xff]
    %v253 = vld [vmem:[#allocation7 + $0x120] sm:$0xff]
    %v254 = vld [vmem:[#allocation7 + $0x128] sm:$0xff]
    %v255 = vld [vmem:[#allocation7 + $0x130] sm:$0xff]
    %v256 = vld [vmem:[#allocation7 + $0x138] sm:$0xff]
    %v257 = vld [vmem:[#allocation7 + $0x140] sm:$0xff]
    %v258 = vld [vmem:[#allocation7 + $0x148] sm:$0xff]
    %v259 = vld [vmem:[#allocation7 + $0x150] sm:$0xff]
    %v260 = vld [vmem:[#allocation7 + $0x158] sm:$0xff]
    %v261 = vld [vmem:[#allocation7 + $0x160] sm:$0xff]
    %v262 = vld [vmem:[#allocation7 + $0x168] sm:$0xff]
    %v263 = vld [vmem:[#allocation7 + $0x170] sm:$0xff]
    %v264 = vld [vmem:[#allocation7 + $0x178] sm:$0xff]
    %v265 = vld [vmem:[#allocation7 + $0x180] sm:$0xff]
    %v266 = vld [vmem:[#allocation7 + $0x188] sm:$0xff]
    %v267 = vld [vmem:[#allocation7 + $0x190] sm:$0xff]
    %v268 = vld [vmem:[#allocation7 + $0x198] sm:$0xff]
    %v269 = vld [vmem:[#allocation7 + $0x1a0] sm:$0xff]
    %v270 = vld [vmem:[#allocation7 + $0x1a8] sm:$0xff]
    %v271 = vld [vmem:[#allocation7 + $0x1b0] sm:$0xff]
    %v272 = vld [vmem:[#allocation7 + $0x1b8] sm:$0xff]
    %v273 = vld [vmem:[#allocation7 + $0x1c0] sm:$0xff]
    %v274 = vld [vmem:[#allocation7 + $0x1c8] sm:$0xff]
    %v275 = vld [vmem:[#allocation7 + $0x1d0] sm:$0xff]
    %v276 = vld [vmem:[#allocation7 + $0x1d8] sm:$0xff]
    %v277 = vld [vmem:[#allocation7 + $0x1e0] sm:$0xff]
    %v278 = vld [vmem:[#allocation7 + $0x1e8] sm:$0xff]
    %v279 = vld [vmem:[#allocation7 + $0x1f0] sm:$0xff]
    %v280 = vld [vmem:[#allocation7 + $0x1f8] sm:$0xff]
    %v281 = vld [vmem:[%s4] sm:$0x3]
    %v283 = vlaneseq
    %v284 = vshrl.u32 %v283, 7
    %v285 = vsub.s32 0, %v284
    %v286 = vrot.slane %v281, %v285
    %v287 = vlaneseq
    %v288 = vshrl.u32 %v287, 7
    %v289 = vsub.s32 1, %v288
    %v290 = vrot.slane %v281, %v289
    %293 = vmatprep.subr.mxu0 %v248
    %294 = vmatpush1.msra.mxu0 %v247
    %295 = vmatprep.subr.mxu0 %v246
    %296 = vmatpush1.msra.mxu0 %v245
    %297 = vmatprep.subr.mxu0 %v244
    %298 = vmatpush1.msra.mxu0 %v243
    %299 = vmatprep.subr.mxu0 %v242
    %300 = vmatpush1.msra.mxu0 %v241
    %301 = vmatprep.subr.mxu0 %v240
    %302 = vmatpush1.msra.mxu0 %v239
    %303 = vmatprep.subr.mxu0 %v238
    %304 = vmatpush1.msra.mxu0 %v237
    %305 = vmatprep.subr.mxu0 %v236
    %306 = vmatpush1.msra.mxu0 %v235
    %307 = vmatprep.subr.mxu0 %v234
    %308 = vmatpush1.msra.mxu0 %v233
    %309 = vmatprep.subr.mxu0 %v232
    %310 = vmatpush1.msra.mxu0 %v231
    %311 = vmatprep.subr.mxu0 %v230
    %312 = vmatpush1.msra.mxu0 %v229
    %313 = vmatprep.subr.mxu0 %v228
    %314 = vmatpush1.msra.mxu0 %v227
    %315 = vmatprep.subr.mxu0 %v226
    %316 = vmatpush1.msra.mxu0 %v225
    %317 = vmatprep.subr.mxu0 %v224
    %318 = vmatpush1.msra.mxu0 %v223
    %319 = vmatprep.subr.mxu0 %v222
    %320 = vmatpush1.msra.mxu0 %v221
    %321 = vmatprep.subr.mxu0 %v220
    %322 = vmatpush1.msra.mxu0 %v219
    %323 = vmatprep.subr.mxu0 %v218
    %324 = vmatpush1.msra.mxu0 %v217
    %325 = vmatprep.subr.mxu0 %v280
    %326 = vmatpush2.msra.mxu0 %v279
    %327 = vmatprep.subr.mxu0 %v278
    %328 = vmatpush2.msra.mxu0 %v277
    %329 = vmatprep.subr.mxu0 %v276
    %330 = vmatpush2.msra.mxu0 %v275
    %331 = vmatprep.subr.mxu0 %v274
    %332 = vmatpush2.msra.mxu0 %v273
    %333 = vmatprep.subr.mxu0 %v272
    %334 = vmatpush2.msra.mxu0 %v271
    %335 = vmatprep.subr.mxu0 %v270
    %336 = vmatpush2.msra.mxu0 %v269
    %337 = vmatprep.subr.mxu0 %v268
    %338 = vmatpush2.msra.mxu0 %v267
    %339 = vmatprep.subr.mxu0 %v266
    %340 = vmatpush2.msra.mxu0 %v265
    %341 = vmatprep.subr.mxu0 %v264
    %342 = vmatpush2.msra.mxu0 %v263
    %343 = vmatprep.subr.mxu0 %v262
    %344 = vmatpush2.msra.mxu0 %v261
    %345 = vmatprep.subr.mxu0 %v260
    %346 = vmatpush2.msra.mxu0 %v259
    %347 = vmatprep.subr.mxu0 %v258
    %348 = vmatpush2.msra.mxu0 %v257
    %349 = vmatprep.subr.mxu0 %v256
    %350 = vmatpush2.msra.mxu0 %v255
    %351 = vmatprep.subr.mxu0 %v254
    %352 = vmatpush2.msra.mxu0 %v253
    %353 = vmatprep.subr.mxu0 %v252
    %354 = vmatpush2.msra.mxu0 %v251
    %355 = vmatprep.subr.mxu0 %v250
    %356 = vmatpush2.msra.mxu0 %v249
    %357 = vmatprep.mubr.f32.mxu0 %v216
    %358 = vmatmul.mubr.f32.gmra.mxu0 %v215
    %v359 = vpop.f32.mrf.mxu0
    %v360 = vadd.f32 %v286, %v359
    %v361 = vpop.f32.mrf.mxu0
    %v362 = vadd.f32 %v290, %v361
    %363 = vdwg.mxu0
    %v364 = vmax.f32 %v360, 0.0
    %v365 = vmax.f32 %v362, 0.0
    %v366 = vld [vmem:[#allocation8] sm:$0xff]
    %v367 = vld [vmem:[#allocation8 + $0x8] sm:$0xff]
    %v368 = vld [vmem:[#allocation8 + $0x10] sm:$0xff]
    %v369 = vld [vmem:[#allocation8 + $0x18] sm:$0xff]
    %v370 = vld [vmem:[#allocation8 + $0x20] sm:$0xff]
    %v371 = vld [vmem:[#allocation8 + $0x28] sm:$0xff]
    %v372 = vld [vmem:[#allocation8 + $0x30] sm:$0xff]
    %v373 = vld [vmem:[#allocation8 + $0x38] sm:$0xff]
    %v374 = vld [vmem:[#allocation8 + $0x40] sm:$0xff]
    %v375 = vld [vmem:[#allocation8 + $0x48] sm:$0xff]
    %v376 = vld [vmem:[#allocation8 + $0x50] sm:$0xff]
    %v377 = vld [vmem:[#allocation8 + $0x58] sm:$0xff]
    %v378 = vld [vmem:[#allocation8 + $0x60] sm:$0xff]
    %v379 = vld [vmem:[#allocation8 + $0x68] sm:$0xff]
    %v380 = vld [vmem:[#allocation8 + $0x70] sm:$0xff]
    %v381 = vld [vmem:[#allocation8 + $0x78] sm:$0xff]
    %v382 = vld [vmem:[#allocation8 + $0x80] sm:$0xff]
    %v383 = vld [vmem:[#allocation8 + $0x88] sm:$0xff]
    %v384 = vld [vmem:[#allocation8 + $0x90] sm:$0xff]
    %v385 = vld [vmem:[#allocation8 + $0x98] sm:$0xff]
    %v386 = vld [vmem:[#allocation8 + $0xa0] sm:$0xff]
    %v387 = vld [vmem:[#allocation8 + $0xa8] sm:$0xff]
    %v388 = vld [vmem:[#allocation8 + $0xb0] sm:$0xff]
    %v389 = vld [vmem:[#allocation8 + $0xb8] sm:$0xff]
    %v390 = vld [vmem:[#allocation8 + $0xc0] sm:$0xff]
    %v391 = vld [vmem:[#allocation8 + $0xc8] sm:$0xff]
    %v392 = vld [vmem:[#allocation8 + $0xd0] sm:$0xff]
    %v393 = vld [vmem:[#allocation8 + $0xd8] sm:$0xff]
    %v394 = vld [vmem:[#allocation8 + $0xe0] sm:$0xff]
    %v395 = vld [vmem:[#allocation8 + $0xe8] sm:$0xff]
    %v396 = vld [vmem:[#allocation8 + $0xf0] sm:$0xff]
    %v397 = vld [vmem:[#allocation8 + $0xf8] sm:$0xff]
    %v398 = vld [vmem:[#allocation8 + $0x100] sm:$0xff]
    %v399 = vld [vmem:[#allocation8 + $0x108] sm:$0xff]
    %v400 = vld [vmem:[#allocation8 + $0x110] sm:$0xff]
    %v401 = vld [vmem:[#allocation8 + $0x118] sm:$0xff]
    %v402 = vld [vmem:[#allocation8 + $0x120] sm:$0xff]
    %v403 = vld [vmem:[#allocation8 + $0x128] sm:$0xff]
    %v404 = vld [vmem:[#allocation8 + $0x130] sm:$0xff]
    %v405 = vld [vmem:[#allocation8 + $0x138] sm:$0xff]
    %v406 = vld [vmem:[#allocation8 + $0x140] sm:$0xff]
    %v407 = vld [vmem:[#allocation8 + $0x148] sm:$0xff]
    %v408 = vld [vmem:[#allocation8 + $0x150] sm:$0xff]
    %v409 = vld [vmem:[#allocation8 + $0x158] sm:$0xff]
    %v410 = vld [vmem:[#allocation8 + $0x160] sm:$0xff]
    %v411 = vld [vmem:[#allocation8 + $0x168] sm:$0xff]
    %v412 = vld [vmem:[#allocation8 + $0x170] sm:$0xff]
    %v413 = vld [vmem:[#allocation8 + $0x178] sm:$0xff]
    %v414 = vld [vmem:[#allocation8 + $0x180] sm:$0xff]
    %v415 = vld [vmem:[#allocation8 + $0x188] sm:$0xff]
    %v416 = vld [vmem:[#allocation8 + $0x190] sm:$0xff]
    %v417 = vld [vmem:[#allocation8 + $0x198] sm:$0xff]
    %v418 = vld [vmem:[#allocation8 + $0x1a0] sm:$0xff]
    %v419 = vld [vmem:[#allocation8 + $0x1a8] sm:$0xff]
    %v420 = vld [vmem:[#allocation8 + $0x1b0] sm:$0xff]
    %v421 = vld [vmem:[#allocation8 + $0x1b8] sm:$0xff]
    %v422 = vld [vmem:[#allocation8 + $0x1c0] sm:$0xff]
    %v423 = vld [vmem:[#allocation8 + $0x1c8] sm:$0xff]
    %v424 = vld [vmem:[#allocation8 + $0x1d0] sm:$0xff]
    %v425 = vld [vmem:[#allocation8 + $0x1d8] sm:$0xff]
    %v426 = vld [vmem:[#allocation8 + $0x1e0] sm:$0xff]
    %v427 = vld [vmem:[#allocation8 + $0x1e8] sm:$0xff]
    %v428 = vld [vmem:[#allocation8 + $0x1f0] sm:$0xff]
    %v429 = vld [vmem:[#allocation8 + $0x1f8] sm:$0xff]
    %v430 = vld [vmem:[#allocation8 + $0x200] sm:$0xff]
    %v431 = vld [vmem:[#allocation8 + $0x208] sm:$0xff]
    %v432 = vld [vmem:[#allocation8 + $0x210] sm:$0xff]
    %v433 = vld [vmem:[#allocation8 + $0x218] sm:$0xff]
    %v434 = vld [vmem:[#allocation8 + $0x220] sm:$0xff]
    %v435 = vld [vmem:[#allocation8 + $0x228] sm:$0xff]
    %v436 = vld [vmem:[#allocation8 + $0x230] sm:$0xff]
    %v437 = vld [vmem:[#allocation8 + $0x238] sm:$0xff]
    %v438 = vld [vmem:[#allocation8 + $0x240] sm:$0xff]
    %v439 = vld [vmem:[#allocation8 + $0x248] sm:$0xff]
    %v440 = vld [vmem:[#allocation8 + $0x250] sm:$0xff]
    %v441 = vld [vmem:[#allocation8 + $0x258] sm:$0xff]
    %v442 = vld [vmem:[#allocation8 + $0x260] sm:$0xff]
    %v443 = vld [vmem:[#allocation8 + $0x268] sm:$0xff]
    %v444 = vld [vmem:[#allocation8 + $0x270] sm:$0xff]
    %v445 = vld [vmem:[#allocation8 + $0x278] sm:$0xff]
    %v446 = vld [vmem:[#allocation8 + $0x280] sm:$0xff]
    %v447 = vld [vmem:[#allocation8 + $0x288] sm:$0xff]
    %v448 = vld [vmem:[#allocation8 + $0x290] sm:$0xff]
    %v449 = vld [vmem:[#allocation8 + $0x298] sm:$0xff]
    %v450 = vld [vmem:[#allocation8 + $0x2a0] sm:$0xff]
    %v451 = vld [vmem:[#allocation8 + $0x2a8] sm:$0xff]
    %v452 = vld [vmem:[#allocation8 + $0x2b0] sm:$0xff]
    %v453 = vld [vmem:[#allocation8 + $0x2b8] sm:$0xff]
    %v454 = vld [vmem:[#allocation8 + $0x2c0] sm:$0xff]
    %v455 = vld [vmem:[#allocation8 + $0x2c8] sm:$0xff]
    %v456 = vld [vmem:[#allocation8 + $0x2d0] sm:$0xff]
    %v457 = vld [vmem:[#allocation8 + $0x2d8] sm:$0xff]
    %v458 = vld [vmem:[#allocation8 + $0x2e0] sm:$0xff]
    %v459 = vld [vmem:[#allocation8 + $0x2e8] sm:$0xff]
    %v460 = vld [vmem:[#allocation8 + $0x2f0] sm:$0xff]
    %v461 = vld [vmem:[#allocation8 + $0x2f8] sm:$0xff]
    %v462 = vld [vmem:[#allocation8 + $0x300] sm:$0xff]
    %v463 = vld [vmem:[#allocation8 + $0x308] sm:$0xff]
    %v464 = vld [vmem:[#allocation8 + $0x310] sm:$0xff]
    %v465 = vld [vmem:[#allocation8 + $0x318] sm:$0xff]
    %v466 = vld [vmem:[#allocation8 + $0x320] sm:$0xff]
    %v467 = vld [vmem:[#allocation8 + $0x328] sm:$0xff]
    %v468 = vld [vmem:[#allocation8 + $0x330] sm:$0xff]
    %v469 = vld [vmem:[#allocation8 + $0x338] sm:$0xff]
    %v470 = vld [vmem:[#allocation8 + $0x340] sm:$0xff]
    %v471 = vld [vmem:[#allocation8 + $0x348] sm:$0xff]
    %v472 = vld [vmem:[#allocation8 + $0x350] sm:$0xff]
    %v473 = vld [vmem:[#allocation8 + $0x358] sm:$0xff]
    %v474 = vld [vmem:[#allocation8 + $0x360] sm:$0xff]
    %v475 = vld [vmem:[#allocation8 + $0x368] sm:$0xff]
    %v476 = vld [vmem:[#allocation8 + $0x370] sm:$0xff]
    %v477 = vld [vmem:[#allocation8 + $0x378] sm:$0xff]
    %v478 = vld [vmem:[#allocation8 + $0x380] sm:$0xff]
    %v479 = vld [vmem:[#allocation8 + $0x388] sm:$0xff]
    %v480 = vld [vmem:[#allocation8 + $0x390] sm:$0xff]
    %v481 = vld [vmem:[#allocation8 + $0x398] sm:$0xff]
    %v482 = vld [vmem:[#allocation8 + $0x3a0] sm:$0xff]
    %v483 = vld [vmem:[#allocation8 + $0x3a8] sm:$0xff]
    %v484 = vld [vmem:[#allocation8 + $0x3b0] sm:$0xff]
    %v485 = vld [vmem:[#allocation8 + $0x3b8] sm:$0xff]
    %v486 = vld [vmem:[#allocation8 + $0x3c0] sm:$0xff]
    %v487 = vld [vmem:[#allocation8 + $0x3c8] sm:$0xff]
    %v488 = vld [vmem:[#allocation8 + $0x3d0] sm:$0xff]
    %v489 = vld [vmem:[#allocation8 + $0x3d8] sm:$0xff]
    %v490 = vld [vmem:[#allocation8 + $0x3e0] sm:$0xff]
    %v491 = vld [vmem:[#allocation8 + $0x3e8] sm:$0xff]
    %v492 = vld [vmem:[#allocation8 + $0x3f0] sm:$0xff]
    %v493 = vld [vmem:[#allocation8 + $0x3f8] sm:$0xff]
    %v494 = vld [vmem:[#allocation8 + $0x400] sm:$0xff]
    %v495 = vld [vmem:[#allocation8 + $0x408] sm:$0xff]
    %v496 = vld [vmem:[#allocation8 + $0x410] sm:$0xff]
    %v497 = vld [vmem:[#allocation8 + $0x418] sm:$0xff]
    %v498 = vld [vmem:[#allocation8 + $0x420] sm:$0xff]
    %v499 = vld [vmem:[#allocation8 + $0x428] sm:$0xff]
    %v500 = vld [vmem:[#allocation8 + $0x430] sm:$0xff]
    %v501 = vld [vmem:[#allocation8 + $0x438] sm:$0xff]
    %v502 = vld [vmem:[#allocation8 + $0x440] sm:$0xff]
    %v503 = vld [vmem:[#allocation8 + $0x448] sm:$0xff]
    %v504 = vld [vmem:[#allocation8 + $0x450] sm:$0xff]
    %v505 = vld [vmem:[#allocation8 + $0x458] sm:$0xff]
    %v506 = vld [vmem:[#allocation8 + $0x460] sm:$0xff]
    %v507 = vld [vmem:[#allocation8 + $0x468] sm:$0xff]
    %v508 = vld [vmem:[#allocation8 + $0x470] sm:$0xff]
    %v509 = vld [vmem:[#allocation8 + $0x478] sm:$0xff]
    %v510 = vld [vmem:[#allocation8 + $0x480] sm:$0xff]
    %v511 = vld [vmem:[#allocation8 + $0x488] sm:$0xff]
    %v512 = vld [vmem:[#allocation8 + $0x490] sm:$0xff]
    %v513 = vld [vmem:[#allocation8 + $0x498] sm:$0xff]
    %v514 = vld [vmem:[#allocation8 + $0x4a0] sm:$0xff]
    %v515 = vld [vmem:[#allocation8 + $0x4a8] sm:$0xff]
    %v516 = vld [vmem:[#allocation8 + $0x4b0] sm:$0xff]
    %v517 = vld [vmem:[#allocation8 + $0x4b8] sm:$0xff]
    %v518 = vld [vmem:[#allocation8 + $0x4c0] sm:$0xff]
    %v519 = vld [vmem:[#allocation8 + $0x4c8] sm:$0xff]
    %v520 = vld [vmem:[#allocation8 + $0x4d0] sm:$0xff]
    %v521 = vld [vmem:[#allocation8 + $0x4d8] sm:$0xff]
    %v522 = vld [vmem:[#allocation8 + $0x4e0] sm:$0xff]
    %v523 = vld [vmem:[#allocation8 + $0x4e8] sm:$0xff]
    %v524 = vld [vmem:[#allocation8 + $0x4f0] sm:$0xff]
    %v525 = vld [vmem:[#allocation8 + $0x4f8] sm:$0xff]
    %v526 = vld [vmem:[%s6] sm:$0x1f]
    %v528 = vlaneseq
    %v529 = vshrl.u32 %v528, 7
    %v530 = vsub.s32 0, %v529
    %v531 = vrot.slane %v526, %v530
    %v532 = vlaneseq
    %v533 = vshrl.u32 %v532, 7
    %v534 = vsub.s32 1, %v533
    %v535 = vrot.slane %v526, %v534
    %v536 = vlaneseq
    %v537 = vshrl.u32 %v536, 7
    %v538 = vsub.s32 2, %v537
    %v539 = vrot.slane %v526, %v538
    %v540 = vlaneseq
    %v541 = vshrl.u32 %v540, 7
    %v542 = vsub.s32 3, %v541
    %v543 = vrot.slane %v526, %v542
    %v544 = vlaneseq
    %v545 = vshrl.u32 %v544, 7
    %v546 = vsub.s32 4, %v545
    %v547 = vrot.slane %v526, %v546
    %553 = vmatprep.subr.mxu0 %v442
    %554 = vmatpush1.msra.mxu0 %v441
    %555 = vmatprep.subr.mxu0 %v437
    %556 = vmatpush1.msra.mxu0 %v436
    %557 = vmatprep.subr.mxu0 %v432
    %558 = vmatpush1.msra.mxu0 %v431
    %559 = vmatprep.subr.mxu0 %v427
    %560 = vmatpush1.msra.mxu0 %v426
    %561 = vmatprep.subr.mxu0 %v422
    %562 = vmatpush1.msra.mxu0 %v421
    %563 = vmatprep.subr.mxu0 %v417
    %564 = vmatpush1.msra.mxu0 %v416
    %565 = vmatprep.subr.mxu0 %v412
    %566 = vmatpush1.msra.mxu0 %v411
    %567 = vmatprep.subr.mxu0 %v407
    %568 = vmatpush1.msra.mxu0 %v406
    %569 = vmatprep.subr.mxu0 %v402
    %570 = vmatpush1.msra.mxu0 %v401
    %571 = vmatprep.subr.mxu0 %v397
    %572 = vmatpush1.msra.mxu0 %v396
    %573 = vmatprep.subr.mxu0 %v392
    %574 = vmatpush1.msra.mxu0 %v391
    %575 = vmatprep.subr.mxu0 %v387
    %576 = vmatpush1.msra.mxu0 %v386
    %577 = vmatprep.subr.mxu0 %v382
    %578 = vmatpush1.msra.mxu0 %v381
    %579 = vmatprep.subr.mxu0 %v377
    %580 = vmatpush1.msra.mxu0 %v376
    %581 = vmatprep.subr.mxu0 %v372
    %582 = vmatpush1.msra.mxu0 %v371
    %583 = vmatprep.subr.mxu0 %v367
    %584 = vmatpush1.msra.mxu0 %v366
    %585 = vmatprep.subr.mxu0 %v522
    %586 = vmatpush2.msra.mxu0 %v521
    %587 = vmatprep.subr.mxu0 %v517
    %588 = vmatpush2.msra.mxu0 %v516
    %589 = vmatprep.subr.mxu0 %v512
    %590 = vmatpush2.msra.mxu0 %v511
    %591 = vmatprep.subr.mxu0 %v507
    %592 = vmatpush2.msra.mxu0 %v506
    %593 = vmatprep.subr.mxu0 %v502
    %594 = vmatpush2.msra.mxu0 %v501
    %595 = vmatprep.subr.mxu0 %v497
    %596 = vmatpush2.msra.mxu0 %v496
    %597 = vmatprep.subr.mxu0 %v492
    %598 = vmatpush2.msra.mxu0 %v491
    %599 = vmatprep.subr.mxu0 %v487
    %600 = vmatpush2.msra.mxu0 %v486
    %601 = vmatprep.subr.mxu0 %v482
    %602 = vmatpush2.msra.mxu0 %v481
    %603 = vmatprep.subr.mxu0 %v477
    %604 = vmatpush2.msra.mxu0 %v476
    %605 = vmatprep.subr.mxu0 %v472
    %606 = vmatpush2.msra.mxu0 %v471
    %607 = vmatprep.subr.mxu0 %v467
    %608 = vmatpush2.msra.mxu0 %v466
    %609 = vmatprep.subr.mxu0 %v462
    %610 = vmatpush2.msra.mxu0 %v461
    %611 = vmatprep.subr.mxu0 %v457
    %612 = vmatpush2.msra.mxu0 %v456
    %613 = vmatprep.subr.mxu0 %v452
    %614 = vmatpush2.msra.mxu0 %v451
    %615 = vmatprep.subr.mxu0 %v447
    %616 = vmatpush2.msra.mxu0 %v446
    %617 = vmatprep.mubr.f32.mxu0 %v365
    %618 = vmatmul.mubr.f32.gmra.mxu0 %v364
    %v619 = vpop.f32.mrf.mxu0
    %v620 = vadd.f32 %v531, %v619
    %v621 = vpop.f32.mrf.mxu0
    %v622 = vadd.f32 %v535, %v621
    %623 = vdwg.mxu0
    %624 = vmatprep.subr.mxu0 %v444
    %625 = vmatpush1.msra.mxu0 %v443
    %626 = vmatprep.subr.mxu0 %v439
    %627 = vmatpush1.msra.mxu0 %v438
    %628 = vmatprep.subr.mxu0 %v434
    %629 = vmatpush1.msra.mxu0 %v433
    %630 = vmatprep.subr.mxu0 %v429
    %631 = vmatpush1.msra.mxu0 %v428
    %632 = vmatprep.subr.mxu0 %v424
    %633 = vmatpush1.msra.mxu0 %v423
    %634 = vmatprep.subr.mxu0 %v419
    %635 = vmatpush1.msra.mxu0 %v418
    %636 = vmatprep.subr.mxu0 %v414
    %637 = vmatpush1.msra.mxu0 %v413
    %638 = vmatprep.subr.mxu0 %v409
    %639 = vmatpush1.msra.mxu0 %v408
    %640 = vmatprep.subr.mxu0 %v404
    %641 = vmatpush1.msra.mxu0 %v403
    %642 = vmatprep.subr.mxu0 %v399
    %643 = vmatpush1.msra.mxu0 %v398
    %644 = vmatprep.subr.mxu0 %v394
    %645 = vmatpush1.msra.mxu0 %v393
    %646 = vmatprep.subr.mxu0 %v389
    %647 = vmatpush1.msra.mxu0 %v388
    %648 = vmatprep.subr.mxu0 %v384
    %649 = vmatpush1.msra.mxu0 %v383
    %650 = vmatprep.subr.mxu0 %v379
    %651 = vmatpush1.msra.mxu0 %v378
    %652 = vmatprep.subr.mxu0 %v374
    %653 = vmatpush1.msra.mxu0 %v373
    %654 = vmatprep.subr.mxu0 %v369
    %655 = vmatpush1.msra.mxu0 %v368
    %656 = vmatprep.subr.mxu0 %v524
    %657 = vmatpush2.msra.mxu0 %v523
    %658 = vmatprep.subr.mxu0 %v519
    %659 = vmatpush2.msra.mxu0 %v518
    %660 = vmatprep.subr.mxu0 %v514
    %661 = vmatpush2.msra.mxu0 %v513
    %662 = vmatprep.subr.mxu0 %v509
    %663 = vmatpush2.msra.mxu0 %v508
    %664 = vmatprep.subr.mxu0 %v504
    %665 = vmatpush2.msra.mxu0 %v503
    %666 = vmatprep.subr.mxu0 %v499
    %667 = vmatpush2.msra.mxu0 %v498
    %668 = vmatprep.subr.mxu0 %v494
    %669 = vmatpush2.msra.mxu0 %v493
    %670 = vmatprep.subr.mxu0 %v489
    %671 = vmatpush2.msra.mxu0 %v488
    %672 = vmatprep.subr.mxu0 %v484
    %673 = vmatpush2.msra.mxu0 %v483
    %674 = vmatprep.subr.mxu0 %v479
    %675 = vmatpush2.msra.mxu0 %v478
    %676 = vmatprep.subr.mxu0 %v474
    %677 = vmatpush2.msra.mxu0 %v473
    %678 = vmatprep.subr.mxu0 %v469
    %679 = vmatpush2.msra.mxu0 %v468
    %680 = vmatprep.subr.mxu0 %v464
    %681 = vmatpush2.msra.mxu0 %v463
    %682 = vmatprep.subr.mxu0 %v459
    %683 = vmatpush2.msra.mxu0 %v458
    %684 = vmatprep.subr.mxu0 %v454
    %685 = vmatpush2.msra.mxu0 %v453
    %686 = vmatprep.subr.mxu0 %v449
    %687 = vmatpush2.msra.mxu0 %v448
    %688 = vmatprep.mubr.f32.mxu0 %v365
    %689 = vmatmul.mubr.f32.gmra.mxu0 %v364
    %v690 = vpop.f32.mrf.mxu0
    %v691 = vadd.f32 %v539, %v690
    %v692 = vpop.f32.mrf.mxu0
    %v693 = vadd.f32 %v543, %v692
    %694 = vdwg.mxu0
    %695 = vmatprep.subr.mxu0 0.0
    %696 = vmatpush1.msra.mxu0 %v445
    %697 = vmatprep.subr.mxu0 0.0
    %698 = vmatpush1.msra.mxu0 %v440
    %699 = vmatprep.subr.mxu0 0.0
    %700 = vmatpush1.msra.mxu0 %v435
    %701 = vmatprep.subr.mxu0 0.0
    %702 = vmatpush1.msra.mxu0 %v430
    %703 = vmatprep.subr.mxu0 0.0
    %704 = vmatpush1.msra.mxu0 %v425
    %705 = vmatprep.subr.mxu0 0.0
    %706 = vmatpush1.msra.mxu0 %v420
    %707 = vmatprep.subr.mxu0 0.0
    %708 = vmatpush1.msra.mxu0 %v415
    %709 = vmatprep.subr.mxu0 0.0
    %710 = vmatpush1.msra.mxu0 %v410
    %711 = vmatprep.subr.mxu0 0.0
    %712 = vmatpush1.msra.mxu0 %v405
    %713 = vmatprep.subr.mxu0 0.0
    %714 = vmatpush1.msra.mxu0 %v400
    %715 = vmatprep.subr.mxu0 0.0
    %716 = vmatpush1.msra.mxu0 %v395
    %717 = vmatprep.subr.mxu0 0.0
    %718 = vmatpush1.msra.mxu0 %v390
    %719 = vmatprep.subr.mxu0 0.0
    %720 = vmatpush1.msra.mxu0 %v385
    %721 = vmatprep.subr.mxu0 0.0
    %722 = vmatpush1.msra.mxu0 %v380
    %723 = vmatprep.subr.mxu0 0.0
    %724 = vmatpush1.msra.mxu0 %v375
    %725 = vmatprep.subr.mxu0 0.0
    %726 = vmatpush1.msra.mxu0 %v370
    %727 = vmatprep.subr.mxu0 0.0
    %728 = vmatpush2.msra.mxu0 %v525
    %729 = vmatprep.subr.mxu0 0.0
    %730 = vmatpush2.msra.mxu0 %v520
    %731 = vmatprep.subr.mxu0 0.0
    %732 = vmatpush2.msra.mxu0 %v515
    %733 = vmatprep.subr.mxu0 0.0
    %734 = vmatpush2.msra.mxu0 %v510
    %735 = vmatprep.subr.mxu0 0.0
    %736 = vmatpush2.msra.mxu0 %v505
    %737 = vmatprep.subr.mxu0 0.0
    %738 = vmatpush2.msra.mxu0 %v500
    %739 = vmatprep.subr.mxu0 0.0
    %740 = vmatpush2.msra.mxu0 %v495
    %741 = vmatprep.subr.mxu0 0.0
    %742 = vmatpush2.msra.mxu0 %v490
    %743 = vmatprep.subr.mxu0 0.0
    %744 = vmatpush2.msra.mxu0 %v485
    %745 = vmatprep.subr.mxu0 0.0
    %746 = vmatpush2.msra.mxu0 %v480
    %747 = vmatprep.subr.mxu0 0.0
    %748 = vmatpush2.msra.mxu0 %v475
    %749 = vmatprep.subr.mxu0 0.0
    %750 = vmatpush2.msra.mxu0 %v470
    %751 = vmatprep.subr.mxu0 0.0
    %752 = vmatpush2.msra.mxu0 %v465
    %753 = vmatprep.subr.mxu0 0.0
    %754 = vmatpush2.msra.mxu0 %v460
    %755 = vmatprep.subr.mxu0 0.0
    %756 = vmatpush2.msra.mxu0 %v455
    %757 = vmatprep.subr.mxu0 0.0
    %758 = vmatpush2.msra.mxu0 %v450
    %759 = vmatprep.mubr.f32.mxu0 %v365
    %760 = vmatmul.mubr.f32.gmra.mxu0 %v364
    %v761 = vpop.f32.mrf.mxu0
    %v762 = vadd.f32 %v547, %v761
    %v763 = vpop.f32.mrf.mxu0
    %764 = vdwg.mxu0
    %v765 = vmax.f32 %v620, 0.0
    %v766 = vmax.f32 %v622, 0.0
    %v767 = vmax.f32 %v691, 0.0
    %v768 = vmax.f32 %v693, 0.0
    %v769 = vmax.f32 %v762, 0.0
    %v770 = vld [vmem:[#allocation10] sm:$0xff]
    %v771 = vld [vmem:[#allocation10 + $0x8] sm:$0xff]
    %v772 = vld [vmem:[#allocation10 + $0x10] sm:$0xff]
    %v773 = vld [vmem:[#allocation10 + $0x18] sm:$0xff]
    %v774 = vld [vmem:[#allocation10 + $0x20] sm:$0xff]
    %v775 = vld [vmem:[#allocation10 + $0x28] sm:$0xff]
    %v776 = vld [vmem:[#allocation10 + $0x30] sm:$0xff]
    %v777 = vld [vmem:[#allocation10 + $0x38] sm:$0xff]
    %v778 = vld [vmem:[#allocation10 + $0x40] sm:$0xff]
    %v779 = vld [vmem:[#allocation10 + $0x48] sm:$0xff]
    %v780 = vld [vmem:[#allocation10 + $0x50] sm:$0xff]
    %v781 = vld [vmem:[#allocation10 + $0x58] sm:$0xff]
    %v782 = vld [vmem:[#allocation10 + $0x60] sm:$0xff]
    %v783 = vld [vmem:[#allocation10 + $0x68] sm:$0xff]
    %v784 = vld [vmem:[#allocation10 + $0x70] sm:$0xff]
    %v785 = vld [vmem:[#allocation10 + $0x78] sm:$0xff]
    %v786 = vld [vmem:[#allocation10 + $0x80] sm:$0xff]
    %v787 = vld [vmem:[#allocation10 + $0x88] sm:$0xff]
    %v788 = vld [vmem:[#allocation10 + $0x90] sm:$0xff]
    %v789 = vld [vmem:[#allocation10 + $0x98] sm:$0xff]
    %v790 = vld [vmem:[#allocation10 + $0xa0] sm:$0xff]
    %v791 = vld [vmem:[#allocation10 + $0xa8] sm:$0xff]
    %v792 = vld [vmem:[#allocation10 + $0xb0] sm:$0xff]
    %v793 = vld [vmem:[#allocation10 + $0xb8] sm:$0xff]
    %v794 = vld [vmem:[#allocation10 + $0xc0] sm:$0xff]
    %v795 = vld [vmem:[#allocation10 + $0xc8] sm:$0xff]
    %v796 = vld [vmem:[#allocation10 + $0xd0] sm:$0xff]
    %v797 = vld [vmem:[#allocation10 + $0xd8] sm:$0xff]
    %v798 = vld [vmem:[#allocation10 + $0xe0] sm:$0xff]
    %v799 = vld [vmem:[#allocation10 + $0xe8] sm:$0xff]
    %v800 = vld [vmem:[#allocation10 + $0xf0] sm:$0xff]
    %v801 = vld [vmem:[#allocation10 + $0xf8] sm:$0xff]
    %v802 = vld [vmem:[#allocation10 + $0x100] sm:$0xff]
    %v803 = vld [vmem:[#allocation10 + $0x108] sm:$0xff]
    %v804 = vld [vmem:[#allocation10 + $0x110] sm:$0xff]
    %v805 = vld [vmem:[#allocation10 + $0x118] sm:$0xff]
    %v806 = vld [vmem:[#allocation10 + $0x120] sm:$0xff]
    %v807 = vld [vmem:[#allocation10 + $0x128] sm:$0xff]
    %v808 = vld [vmem:[#allocation10 + $0x130] sm:$0xff]
    %v809 = vld [vmem:[#allocation10 + $0x138] sm:$0xff]
    %v810 = vld [vmem:[#allocation10 + $0x140] sm:$0xff]
    %v811 = vld [vmem:[#allocation10 + $0x148] sm:$0xff]
    %v812 = vld [vmem:[#allocation10 + $0x150] sm:$0xff]
    %v813 = vld [vmem:[#allocation10 + $0x158] sm:$0xff]
    %v814 = vld [vmem:[#allocation10 + $0x160] sm:$0xff]
    %v815 = vld [vmem:[#allocation10 + $0x168] sm:$0xff]
    %v816 = vld [vmem:[#allocation10 + $0x170] sm:$0xff]
    %v817 = vld [vmem:[#allocation10 + $0x178] sm:$0xff]
    %v818 = vld [vmem:[#allocation10 + $0x180] sm:$0xff]
    %v819 = vld [vmem:[#allocation10 + $0x188] sm:$0xff]
    %v820 = vld [vmem:[#allocation10 + $0x190] sm:$0xff]
    %v821 = vld [vmem:[#allocation10 + $0x198] sm:$0xff]
    %v822 = vld [vmem:[#allocation10 + $0x1a0] sm:$0xff]
    %v823 = vld [vmem:[#allocation10 + $0x1a8] sm:$0xff]
    %v824 = vld [vmem:[#allocation10 + $0x1b0] sm:$0xff]
    %v825 = vld [vmem:[#allocation10 + $0x1b8] sm:$0xff]
    %v826 = vld [vmem:[#allocation10 + $0x1c0] sm:$0xff]
    %v827 = vld [vmem:[#allocation10 + $0x1c8] sm:$0xff]
    %v828 = vld [vmem:[#allocation10 + $0x1d0] sm:$0xff]
    %v829 = vld [vmem:[#allocation10 + $0x1d8] sm:$0xff]
    %v830 = vld [vmem:[#allocation10 + $0x1e0] sm:$0xff]
    %v831 = vld [vmem:[#allocation10 + $0x1e8] sm:$0xff]
    %v832 = vld [vmem:[#allocation10 + $0x1f0] sm:$0xff]
    %v833 = vld [vmem:[#allocation10 + $0x1f8] sm:$0xff]
    %v834 = vld [vmem:[#allocation10 + $0x200] sm:$0xff]
    %v835 = vld [vmem:[#allocation10 + $0x208] sm:$0xff]
    %v836 = vld [vmem:[#allocation10 + $0x210] sm:$0xff]
    %v837 = vld [vmem:[#allocation10 + $0x218] sm:$0xff]
    %v838 = vld [vmem:[#allocation10 + $0x220] sm:$0xff]
    %v839 = vld [vmem:[#allocation10 + $0x228] sm:$0xff]
    %v840 = vld [vmem:[#allocation10 + $0x230] sm:$0xff]
    %v841 = vld [vmem:[#allocation10 + $0x238] sm:$0xff]
    %v842 = vld [vmem:[#allocation10 + $0x240] sm:$0xff]
    %v843 = vld [vmem:[#allocation10 + $0x248] sm:$0xff]
    %v844 = vld [vmem:[#allocation10 + $0x250] sm:$0xff]
    %v845 = vld [vmem:[#allocation10 + $0x258] sm:$0xff]
    %v846 = vld [vmem:[#allocation10 + $0x260] sm:$0xff]
    %v847 = vld [vmem:[#allocation10 + $0x268] sm:$0xff]
    %v848 = vld [vmem:[#allocation10 + $0x270] sm:$0xff]
    %v849 = vld [vmem:[#allocation10 + $0x278] sm:$0xff]
    %v850 = vld [vmem:[#allocation10 + $0x280] sm:$0xff]
    %v851 = vld [vmem:[#allocation10 + $0x288] sm:$0xff]
    %v852 = vld [vmem:[#allocation10 + $0x290] sm:$0xff]
    %v853 = vld [vmem:[#allocation10 + $0x298] sm:$0xff]
    %v854 = vld [vmem:[#allocation10 + $0x2a0] sm:$0xff]
    %v855 = vld [vmem:[#allocation10 + $0x2a8] sm:$0xff]
    %v856 = vld [vmem:[#allocation10 + $0x2b0] sm:$0xff]
    %v857 = vld [vmem:[#allocation10 + $0x2b8] sm:$0xff]
    %v858 = vld [vmem:[#allocation10 + $0x2c0] sm:$0xff]
    %v859 = vld [vmem:[#allocation10 + $0x2c8] sm:$0xff]
    %v860 = vld [vmem:[#allocation10 + $0x2d0] sm:$0xff]
    %v861 = vld [vmem:[#allocation10 + $0x2d8] sm:$0xff]
    %v862 = vld [vmem:[#allocation10 + $0x2e0] sm:$0xff]
    %v863 = vld [vmem:[#allocation10 + $0x2e8] sm:$0xff]
    %v864 = vld [vmem:[#allocation10 + $0x2f0] sm:$0xff]
    %v865 = vld [vmem:[#allocation10 + $0x2f8] sm:$0xff]
    %v866 = vld [vmem:[#allocation10 + $0x300] sm:$0xff]
    %v867 = vld [vmem:[#allocation10 + $0x308] sm:$0xff]
    %v868 = vld [vmem:[#allocation10 + $0x310] sm:$0xff]
    %v869 = vld [vmem:[#allocation10 + $0x318] sm:$0xff]
    %v870 = vld [vmem:[#allocation10 + $0x320] sm:$0xff]
    %v871 = vld [vmem:[#allocation10 + $0x328] sm:$0xff]
    %v872 = vld [vmem:[#allocation10 + $0x330] sm:$0xff]
    %v873 = vld [vmem:[#allocation10 + $0x338] sm:$0xff]
    %v874 = vld [vmem:[#allocation10 + $0x340] sm:$0xff]
    %v875 = vld [vmem:[#allocation10 + $0x348] sm:$0xff]
    %v876 = vld [vmem:[#allocation10 + $0x350] sm:$0xff]
    %v877 = vld [vmem:[#allocation10 + $0x358] sm:$0xff]
    %v878 = vld [vmem:[#allocation10 + $0x360] sm:$0xff]
    %v879 = vld [vmem:[#allocation10 + $0x368] sm:$0xff]
    %v880 = vld [vmem:[#allocation10 + $0x370] sm:$0xff]
    %v881 = vld [vmem:[#allocation10 + $0x378] sm:$0xff]
    %v882 = vld [vmem:[#allocation10 + $0x380] sm:$0xff]
    %v883 = vld [vmem:[#allocation10 + $0x388] sm:$0xff]
    %v884 = vld [vmem:[#allocation10 + $0x390] sm:$0xff]
    %v885 = vld [vmem:[#allocation10 + $0x398] sm:$0xff]
    %v886 = vld [vmem:[#allocation10 + $0x3a0] sm:$0xff]
    %v887 = vld [vmem:[#allocation10 + $0x3a8] sm:$0xff]
    %v888 = vld [vmem:[#allocation10 + $0x3b0] sm:$0xff]
    %v889 = vld [vmem:[#allocation10 + $0x3b8] sm:$0xff]
    %v890 = vld [vmem:[#allocation10 + $0x3c0] sm:$0xff]
    %v891 = vld [vmem:[#allocation10 + $0x3c8] sm:$0xff]
    %v892 = vld [vmem:[#allocation10 + $0x3d0] sm:$0xff]
    %v893 = vld [vmem:[#allocation10 + $0x3d8] sm:$0xff]
    %v894 = vld [vmem:[#allocation10 + $0x3e0] sm:$0xff]
    %v895 = vld [vmem:[#allocation10 + $0x3e8] sm:$0xff]
    %v896 = vld [vmem:[#allocation10 + $0x3f0] sm:$0xff]
    %v897 = vld [vmem:[#allocation10 + $0x3f8] sm:$0xff]
    %v898 = vld [vmem:[#allocation10 + $0x400] sm:$0xff]
    %v899 = vld [vmem:[#allocation10 + $0x408] sm:$0xff]
    %v900 = vld [vmem:[#allocation10 + $0x410] sm:$0xff]
    %v901 = vld [vmem:[#allocation10 + $0x418] sm:$0xff]
    %v902 = vld [vmem:[#allocation10 + $0x420] sm:$0xff]
    %v903 = vld [vmem:[#allocation10 + $0x428] sm:$0xff]
    %v904 = vld [vmem:[#allocation10 + $0x430] sm:$0xff]
    %v905 = vld [vmem:[#allocation10 + $0x438] sm:$0xff]
    %v906 = vld [vmem:[#allocation10 + $0x440] sm:$0xff]
    %v907 = vld [vmem:[#allocation10 + $0x448] sm:$0xff]
    %v908 = vld [vmem:[#allocation10 + $0x450] sm:$0xff]
    %v909 = vld [vmem:[#allocation10 + $0x458] sm:$0xff]
    %v910 = vld [vmem:[#allocation10 + $0x460] sm:$0xff]
    %v911 = vld [vmem:[#allocation10 + $0x468] sm:$0xff]
    %v912 = vld [vmem:[#allocation10 + $0x470] sm:$0xff]
    %v913 = vld [vmem:[#allocation10 + $0x478] sm:$0xff]
    %v914 = vld [vmem:[#allocation10 + $0x480] sm:$0xff]
    %v915 = vld [vmem:[#allocation10 + $0x488] sm:$0xff]
    %v916 = vld [vmem:[#allocation10 + $0x490] sm:$0xff]
    %v917 = vld [vmem:[#allocation10 + $0x498] sm:$0xff]
    %v918 = vld [vmem:[#allocation10 + $0x4a0] sm:$0xff]
    %v919 = vld [vmem:[#allocation10 + $0x4a8] sm:$0xff]
    %v920 = vld [vmem:[#allocation10 + $0x4b0] sm:$0xff]
    %v921 = vld [vmem:[#allocation10 + $0x4b8] sm:$0xff]
    %v922 = vld [vmem:[#allocation10 + $0x4c0] sm:$0xff]
    %v923 = vld [vmem:[#allocation10 + $0x4c8] sm:$0xff]
    %v924 = vld [vmem:[#allocation10 + $0x4d0] sm:$0xff]
    %v925 = vld [vmem:[#allocation10 + $0x4d8] sm:$0xff]
    %v926 = vld [vmem:[#allocation10 + $0x4e0] sm:$0xff]
    %v927 = vld [vmem:[#allocation10 + $0x4e8] sm:$0xff]
    %v928 = vld [vmem:[#allocation10 + $0x4f0] sm:$0xff]
    %v929 = vld [vmem:[#allocation10 + $0x4f8] sm:$0xff]
    %v930 = vld [vmem:[%s8] sm:$0x3]
    %v932 = vlaneseq
    %v933 = vshrl.u32 %v932, 7
    %v934 = vsub.s32 0, %v933
    %v935 = vrot.slane %v930, %v934
    %v936 = vlaneseq
    %v937 = vshrl.u32 %v936, 7
    %v938 = vsub.s32 1, %v937
    %v939 = vrot.slane %v930, %v938
    %942 = vmatprep.subr.mxu0 %v801
    %943 = vmatpush1.msra.mxu0 %v800
    %944 = vmatprep.subr.mxu0 %v799
    %945 = vmatpush1.msra.mxu0 %v798
    %946 = vmatprep.subr.mxu0 %v797
    %947 = vmatpush1.msra.mxu0 %v796
    %948 = vmatprep.subr.mxu0 %v795
    %949 = vmatpush1.msra.mxu0 %v794
    %950 = vmatprep.subr.mxu0 %v793
    %951 = vmatpush1.msra.mxu0 %v792
    %952 = vmatprep.subr.mxu0 %v791
    %953 = vmatpush1.msra.mxu0 %v790
    %954 = vmatprep.subr.mxu0 %v789
    %955 = vmatpush1.msra.mxu0 %v788
    %956 = vmatprep.subr.mxu0 %v787
    %957 = vmatpush1.msra.mxu0 %v786
    %958 = vmatprep.subr.mxu0 %v785
    %959 = vmatpush1.msra.mxu0 %v784
    %960 = vmatprep.subr.mxu0 %v783
    %961 = vmatpush1.msra.mxu0 %v782
    %962 = vmatprep.subr.mxu0 %v781
    %963 = vmatpush1.msra.mxu0 %v780
    %964 = vmatprep.subr.mxu0 %v779
    %965 = vmatpush1.msra.mxu0 %v778
    %966 = vmatprep.subr.mxu0 %v777
    %967 = vmatpush1.msra.mxu0 %v776
    %968 = vmatprep.subr.mxu0 %v775
    %969 = vmatpush1.msra.mxu0 %v774
    %970 = vmatprep.subr.mxu0 %v773
    %971 = vmatpush1.msra.mxu0 %v772
    %972 = vmatprep.subr.mxu0 %v771
    %973 = vmatpush1.msra.mxu0 %v770
    %974 = vmatprep.subr.mxu0 %v833
    %975 = vmatpush2.msra.mxu0 %v832
    %976 = vmatprep.subr.mxu0 %v831
    %977 = vmatpush2.msra.mxu0 %v830
    %978 = vmatprep.subr.mxu0 %v829
    %979 = vmatpush2.msra.mxu0 %v828
    %980 = vmatprep.subr.mxu0 %v827
    %981 = vmatpush2.msra.mxu0 %v826
    %982 = vmatprep.subr.mxu0 %v825
    %983 = vmatpush2.msra.mxu0 %v824
    %984 = vmatprep.subr.mxu0 %v823
    %985 = vmatpush2.msra.mxu0 %v822
    %986 = vmatprep.subr.mxu0 %v821
    %987 = vmatpush2.msra.mxu0 %v820
    %988 = vmatprep.subr.mxu0 %v819
    %989 = vmatpush2.msra.mxu0 %v818
    %990 = vmatprep.subr.mxu0 %v817
    %991 = vmatpush2.msra.mxu0 %v816
    %992 = vmatprep.subr.mxu0 %v815
    %993 = vmatpush2.msra.mxu0 %v814
    %994 = vmatprep.subr.mxu0 %v813
    %995 = vmatpush2.msra.mxu0 %v812
    %996 = vmatprep.subr.mxu0 %v811
    %997 = vmatpush2.msra.mxu0 %v810
    %998 = vmatprep.subr.mxu0 %v809
    %999 = vmatpush2.msra.mxu0 %v808
    %1000 = vmatprep.subr.mxu0 %v807
    %1001 = vmatpush2.msra.mxu0 %v806
    %1002 = vmatprep.subr.mxu0 %v805
    %1003 = vmatpush2.msra.mxu0 %v804
    %1004 = vmatprep.subr.mxu0 %v803
    %1005 = vmatpush2.msra.mxu0 %v802
    %1006 = vmatprep.mubr.f32.mxu0 %v766
    %1007 = vmatmul.mubr.f32.gmra.mxu0 %v765
    %v1008 = vpop.f32.mrf.mxu0
    %v1009 = vadd.f32 %v935, %v1008
    %v1010 = vpop.f32.mrf.mxu0
    %v1011 = vadd.f32 %v939, %v1010
    %1012 = vdwg.mxu0
    %1013 = vmatprep.subr.mxu0 %v865
    %1014 = vmatpush1.msra.mxu0 %v864
    %1015 = vmatprep.subr.mxu0 %v863
    %1016 = vmatpush1.msra.mxu0 %v862
    %1017 = vmatprep.subr.mxu0 %v861
    %1018 = vmatpush1.msra.mxu0 %v860
    %1019 = vmatprep.subr.mxu0 %v859
    %1020 = vmatpush1.msra.mxu0 %v858
    %1021 = vmatprep.subr.mxu0 %v857
    %1022 = vmatpush1.msra.mxu0 %v856
    %1023 = vmatprep.subr.mxu0 %v855
    %1024 = vmatpush1.msra.mxu0 %v854
    %1025 = vmatprep.subr.mxu0 %v853
    %1026 = vmatpush1.msra.mxu0 %v852
    %1027 = vmatprep.subr.mxu0 %v851
    %1028 = vmatpush1.msra.mxu0 %v850
    %1029 = vmatprep.subr.mxu0 %v849
    %1030 = vmatpush1.msra.mxu0 %v848
    %1031 = vmatprep.subr.mxu0 %v847
    %1032 = vmatpush1.msra.mxu0 %v846
    %1033 = vmatprep.subr.mxu0 %v845
    %1034 = vmatpush1.msra.mxu0 %v844
    %1035 = vmatprep.subr.mxu0 %v843
    %1036 = vmatpush1.msra.mxu0 %v842
    %1037 = vmatprep.subr.mxu0 %v841
    %1038 = vmatpush1.msra.mxu0 %v840
    %1039 = vmatprep.subr.mxu0 %v839
    %1040 = vmatpush1.msra.mxu0 %v838
    %1041 = vmatprep.subr.mxu0 %v837
    %1042 = vmatpush1.msra.mxu0 %v836
    %1043 = vmatprep.subr.mxu0 %v835
    %1044 = vmatpush1.msra.mxu0 %v834
    %1045 = vmatprep.subr.mxu0 %v897
    %1046 = vmatpush2.msra.mxu0 %v896
    %1047 = vmatprep.subr.mxu0 %v895
    %1048 = vmatpush2.msra.mxu0 %v894
    %1049 = vmatprep.subr.mxu0 %v893
    %1050 = vmatpush2.msra.mxu0 %v892
    %1051 = vmatprep.subr.mxu0 %v891
    %1052 = vmatpush2.msra.mxu0 %v890
    %1053 = vmatprep.subr.mxu0 %v889
    %1054 = vmatpush2.msra.mxu0 %v888
    %1055 = vmatprep.subr.mxu0 %v887
    %1056 = vmatpush2.msra.mxu0 %v886
    %1057 = vmatprep.subr.mxu0 %v885
    %1058 = vmatpush2.msra.mxu0 %v884
    %1059 = vmatprep.subr.mxu0 %v883
    %1060 = vmatpush2.msra.mxu0 %v882
    %1061 = vmatprep.subr.mxu0 %v881
    %1062 = vmatpush2.msra.mxu0 %v880
    %1063 = vmatprep.subr.mxu0 %v879
    %1064 = vmatpush2.msra.mxu0 %v878
    %1065 = vmatprep.subr.mxu0 %v877
    %1066 = vmatpush2.msra.mxu0 %v876
    %1067 = vmatprep.subr.mxu0 %v875
    %1068 = vmatpush2.msra.mxu0 %v874
    %1069 = vmatprep.subr.mxu0 %v873
    %1070 = vmatpush2.msra.mxu0 %v872
    %1071 = vmatprep.subr.mxu0 %v871
    %1072 = vmatpush2.msra.mxu0 %v870
    %1073 = vmatprep.subr.mxu0 %v869
    %1074 = vmatpush2.msra.mxu0 %v868
    %1075 = vmatprep.subr.mxu0 %v867
    %1076 = vmatpush2.msra.mxu0 %v866
    %1077 = vmatprep.mubr.f32.mxu0 %v768
    %1078 = vmatmul.mubr.f32.gmra.mxu0 %v767
    %v1079 = vpop.f32.mrf.mxu0
    %v1080 = vadd.f32 %v1009, %v1079
    %v1081 = vpop.f32.mrf.mxu0
    %v1082 = vadd.f32 %v1011, %v1081
    %1083 = vdwg.mxu0
    %1084 = vmatprep.subr.mxu0 %v929
    %1085 = vmatpush1.msra.mxu0 %v928
    %1086 = vmatprep.subr.mxu0 %v927
    %1087 = vmatpush1.msra.mxu0 %v926
    %1088 = vmatprep.subr.mxu0 %v925
    %1089 = vmatpush1.msra.mxu0 %v924
    %1090 = vmatprep.subr.mxu0 %v923
    %1091 = vmatpush1.msra.mxu0 %v922
    %1092 = vmatprep.subr.mxu0 %v921
    %1093 = vmatpush1.msra.mxu0 %v920
    %1094 = vmatprep.subr.mxu0 %v919
    %1095 = vmatpush1.msra.mxu0 %v918
    %1096 = vmatprep.subr.mxu0 %v917
    %1097 = vmatpush1.msra.mxu0 %v916
    %1098 = vmatprep.subr.mxu0 %v915
    %1099 = vmatpush1.msra.mxu0 %v914
    %1100 = vmatprep.subr.mxu0 %v913
    %1101 = vmatpush1.msra.mxu0 %v912
    %1102 = vmatprep.subr.mxu0 %v911
    %1103 = vmatpush1.msra.mxu0 %v910
    %1104 = vmatprep.subr.mxu0 %v909
    %1105 = vmatpush1.msra.mxu0 %v908
    %1106 = vmatprep.subr.mxu0 %v907
    %1107 = vmatpush1.msra.mxu0 %v906
    %1108 = vmatprep.subr.mxu0 %v905
    %1109 = vmatpush1.msra.mxu0 %v904
    %1110 = vmatprep.subr.mxu0 %v903
    %1111 = vmatpush1.msra.mxu0 %v902
    %1112 = vmatprep.subr.mxu0 %v901
    %1113 = vmatpush1.msra.mxu0 %v900
    %1114 = vmatprep.subr.mxu0 %v899
    %1115 = vmatpush1.msra.mxu0 %v898
    %1116 = vmatprep.subr.mxu0 0.0
    %1117 = vmatpush2.msra.mxu0 0.0
    %1118 = vmatprep.subr.mxu0 0.0
    %1119 = vmatpush2.msra.mxu0 0.0
    %1120 = vmatprep.subr.mxu0 0.0
    %1121 = vmatpush2.msra.mxu0 0.0
    %1122 = vmatprep.subr.mxu0 0.0
    %1123 = vmatpush2.msra.mxu0 0.0
    %1124 = vmatprep.subr.mxu0 0.0
    %1125 = vmatpush2.msra.mxu0 0.0
    %1126 = vmatprep.subr.mxu0 0.0
    %1127 = vmatpush2.msra.mxu0 0.0
    %1128 = vmatprep.subr.mxu0 0.0
    %1129 = vmatpush2.msra.mxu0 0.0
    %1130 = vmatprep.subr.mxu0 0.0
    %1131 = vmatpush2.msra.mxu0 0.0
    %1132 = vmatprep.subr.mxu0 0.0
    %1133 = vmatpush2.msra.mxu0 0.0
    %1134 = vmatprep.subr.mxu0 0.0
    %1135 = vmatpush2.msra.mxu0 0.0
    %1136 = vmatprep.subr.mxu0 0.0
    %1137 = vmatpush2.msra.mxu0 0.0
    %1138 = vmatprep.subr.mxu0 0.0
    %1139 = vmatpush2.msra.mxu0 0.0
    %1140 = vmatprep.subr.mxu0 0.0
    %1141 = vmatpush2.msra.mxu0 0.0
    %1142 = vmatprep.subr.mxu0 0.0
    %1143 = vmatpush2.msra.mxu0 0.0
    %1144 = vmatprep.subr.mxu0 0.0
    %1145 = vmatpush2.msra.mxu0 0.0
    %1146 = vmatprep.subr.mxu0 0.0
    %1147 = vmatpush2.msra.mxu0 0.0
    %1148 = vmatprep.mubr.f32.mxu0 0.0
    %1149 = vmatmul.mubr.f32.gmra.mxu0 %v769
    %v1150 = vpop.f32.mrf.mxu0
    %v1151 = vadd.f32 %v1080, %v1150
    %v1152 = vpop.f32.mrf.mxu0
    %v1153 = vadd.f32 %v1082, %v1152
    %1154 = vdwg.mxu0
    %1155 = vst [vmem:[#allocation11] sm:$0xff] %v1151
    %1156 = vst [vmem:[#allocation11 + $0x8] sm:$0xff] %v1153
    // Predicated region
    $region58: #{tpu_custom_call.1} parent=1 // pred_check
      _
    $region59: #{tpu_custom_call.1} parent=1 // pred_check_branch
      %1158 = sbr.rel (0) target = $region61
    $region60: #{tpu_custom_call.1} parent=1 // pred_region
      %s1160 = ssub.s32 256, 256
      %1161 = vsyncadd [#allocation4], %s1160
      %s1163 = sshll.u32 [#allocation11], 4
      %s1164 = int_to_ptr.vmem [resolvable:$true] %s1163
      %1166 = dma.vmem_to_hbm [thread:$0]  %s1164, 256, %s9, [#allocation4]
    $region61: #{tpu_custom_call.1} parent=1 // pred_fallthru
      _
    // Predicated region
    $region62: #{tpu_custom_call.1} parent=1 // pred_check
      _
    $region63: #{tpu_custom_call.1} parent=1 // pred_check_branch
      %1168 = sbr.rel (0) target = $region65
    $region64: #{tpu_custom_call.1} parent=1 // pred_region
      %1169 = dma.done [#allocation4], 256
    $region65: #{tpu_custom_call.1} parent=1 // pred_fallthru
      _
    %1170 = vsyncpa [#allocation3], 1
    %1171 = vsyncpa [#allocation6], 1
    %1172 = vsyncpa [#allocation9], 1
    %1173 = vsyncpa [#allocation4], 1

</llo_original>
